<compile_context>
chip_gen: v7x
topology: tpu7x:2x2x1
jax: 0.10.0
libtpu: 0.0.40
codegen_flags: <defaults>
</compile_context>

<pallas_src>
import functools

import jax
import jax.numpy as jnp
from jax.experimental import pallas as pl
from jax.experimental.pallas import tpu as pltpu


def _round_up(x, m):
    return (x + m - 1) // m * m


def _num_grid_blocks(batch):
    """2-wide parallel grid on v7x (2 TCs/chip); single fat step elsewhere."""
    try:
        kind = jax.devices()[0].device_kind.lower()
    except Exception:  # pragma: no cover - defensive
        kind = ""
    if "v7" in kind and batch >= 2 and batch % 2 == 0:
        return 2
    return 1


def _rpn_kernel(z_ref, x_ref, wt_ref, b_ref, out_ref, *, Hz, Wz, Wx, lane):
    # z_ref  : (Bblk, C, Hz*Wz)      template feature, NCHW flattened
    # x_ref  : (Bblk, C, Lx_pad)     search feature, flat spatial, zero-padded
    # wt_ref : (CoutPad, C)          fused [cls | loc] 1x1-conv weight^T (0-pad rows)
    # b_ref  : (CoutPad, 1)          fused bias column
    # out_ref: (Bblk, CoutPad, lane) fused head output, lane/sublane-dense
    Bblk, C, _ = x_ref.shape
    T = Hz * Wz

    x = x_ref[...].astype(jnp.float32)    # (Bblk, C, Lx_pad)
    zb = z_ref[...].astype(jnp.float32)   # (Bblk, C, T)

    # Hoist the per-tap z column -> lane broadcasts off the fma chain so the
    # XLU work can overlap with the accumulation.
    zcols = [jnp.broadcast_to(zb[:, :, t:t + 1], (Bblk, C, lane))
             for t in range(T)]

    # Depthwise cross-correlation on the flat spatial axis:
    #   xcorr[b, c, i*Wx + j] = sum_{u,v} x[b, c, (i+u)*Wx + (j+v)] * z[b, c, u*Wz + v]
    # Each tap is a static lane-shifted window of x (shift s = u*Wx + v; all
    # slices in bounds by construction of Lx_pad).  Taps are spread over
    # several independent accumulators (breaks the serial dependence chain)
    # and tree-summed.  Columns with j >= Wo are garbage, dropped in wrapper.
    n_acc = min(4, T)
    partials = []
    for g in range(n_acc):
        acc_g = None
        for idx in range(g, T, n_acc):
            u, v = idx // Wz, idx % Wz
            s = u * Wx + v                       # static flat spatial shift
            term = x[:, :, s:s + lane] * zcols[idx]
            acc_g = term if acc_g is None else acc_g + term
        partials.append(acc_g)
    while len(partials) > 1:
        partials = [partials[i] + partials[i + 1] if i + 1 < len(partials)
                    else partials[i]
                    for i in range(0, len(partials), 2)]
    acc = partials[0]                            # (Bblk, C, lane)

    # Fused cls+loc 1x1-conv heads as one MXU matmul per batch row:
    # (CoutPad, C) @ (C, lane).  The big spatial dim sits on lanes, the
    # output block is a full (CoutPad, lane) tile -> unmasked stores, and the
    # result is written directly (no reshape before the vst).
    w = wt_ref[...].astype(jnp.float32)          # (CoutPad, C)
    bias = b_ref[...].astype(jnp.float32)        # (CoutPad, 1)
    for bi in range(Bblk):
        out_b = jnp.dot(w, acc[bi], preferred_element_type=jnp.float32) + bias
        out_ref[bi] = out_b.astype(out_ref.dtype)


def rpn_forward(z_f_nchw, x_f_nchw, w_cls, b_cls, w_loc, b_loc):
    """z_f, x_f in NCHW (PyTorch convention). Returns (cls, loc) in NCHW."""
    B, C, Hz, Wz = z_f_nchw.shape
    _, _, Hx, Wx = x_f_nchw.shape
    Ho, Wo = Hx - Hz + 1, Wx - Wz + 1
    c_cls = w_cls.shape[1]
    c_loc = w_loc.shape[1]
    c_out = c_cls + c_loc

    n_valid = (Ho - 1) * Wx + Wo            # last valid flat output index + 1
    lane = _round_up(n_valid, 128)          # lane-dense output width (>= 128)
    s_max = (Hz - 1) * Wx + (Wz - 1)        # largest flat tap shift
    lx_pad = _round_up(s_max + lane, 128)   # every shifted slice stays in bounds
    cout_pad = _round_up(c_out, 8)          # sublane-dense head rows

    # NCHW -> flat spatial: free reshapes, no transposes.  Zero-pad x lanes so
    # every shifted window of width `lane` is in bounds (valid output
    # positions only ever read real data: p + s <= n_valid-1 + s_max < Hx*Wx).
    z_flat = z_f_nchw.reshape(B, C, Hz * Wz)
    x_flat = jnp.pad(x_f_nchw.reshape(B, C, Hx * Wx),
                     ((0, 0), (0, 0), (0, lx_pad - Hx * Wx)))

    # Fuse the two 1x1-conv heads into one weight/bias; extra rows are zero
    # and dropped after the call.
    w_fused = jnp.concatenate([w_cls, w_loc], axis=1).T          # (c_out, C)
    w_fused = jnp.pad(w_fused, ((0, cout_pad - c_out), (0, 0)))  # (CoutPad, C)
    b_fused = jnp.concatenate([b_cls[0], b_loc[0]])[:, None]     # (c_out, 1)
    b_fused = jnp.pad(b_fused, ((0, cout_pad - c_out), (0, 0)))  # (CoutPad, 1)

    # Single fat grid step on single-TC chips; 2-wide parallel axis on v7x.
    n_blocks = _num_grid_blocks(B)
    b_blk = B // n_blocks

    kernel = functools.partial(_rpn_kernel, Hz=Hz, Wz=Wz, Wx=Wx, lane=lane)

    out_flat = pl.pallas_call(
        kernel,
        out_shape=jax.ShapeDtypeStruct((B, cout_pad, lane), jnp.float32),
        grid_spec=pltpu.PrefetchScalarGridSpec(
            num_scalar_prefetch=0,
            grid=(n_blocks,),
            in_specs=[
                pl.BlockSpec((b_blk, C, Hz * Wz), lambda g: (g, 0, 0)),
                pl.BlockSpec((b_blk, C, lx_pad), lambda g: (g, 0, 0)),
                pl.BlockSpec((cout_pad, C), lambda g: (0, 0)),
                pl.BlockSpec((cout_pad, 1), lambda g: (0, 0)),
            ],
            out_specs=pl.BlockSpec((b_blk, cout_pad, lane), lambda g: (g, 0, 0)),
        ),
        compiler_params=pltpu.CompilerParams(
            dimension_semantics=("parallel",),
        ),
    )(z_flat, x_flat, w_fused, b_fused)

    # Drop padding rows/columns: (B, CoutPad, lane) -> (B, c_out, Ho, Wo).
    out = out_flat[:, :c_out, :]
    if lane < Ho * Wx:
        out = jnp.pad(out, ((0, 0), (0, 0), (0, Ho * Wx - lane)))
    else:
        out = out[:, :, :Ho * Wx]
    out = out.reshape(B, c_out, Ho, Wx)[:, :, :, :Wo]
    return out[:, :c_cls], out[:, c_cls:]


def _reference(z_f, x_f, w_cls, b_cls, w_loc, b_loc):
    """Pure-JAX reference (NCHW in/out) for correctness checking."""
    B, C, Hz, Wz = z_f.shape
    _, _, Hx, Wx = x_f.shape
    Ho, Wo = Hx - Hz + 1, Wx - Wz + 1
    xcorr = jnp.zeros((B, C, Ho, Wo), jnp.float32)
    for u in range(Hz):
        for v in range(Wz):
            xcorr = xcorr + (x_f[:, :, u:u + Ho, v:v + Wo]
                             * z_f[:, :, u:u + 1, v:v + 1])
    cls = jnp.einsum("bchw,ck->bkhw", xcorr, w_cls) + b_cls[0][None, :, None, None]
    loc = jnp.einsum("bchw,ck->bkhw", xcorr, w_loc) + b_loc[0][None, :, None, None]
    return cls, loc


if __name__ == "__main__":
    # Small, deterministic shapes.
    B, C = 2, 32
    Hz = Wz = 4          # template feature spatial
    Hx = Wx = 12         # search feature spatial
    K = 5                # anchors per location
    C_CLS, C_LOC = 2 * K, 4 * K

    key = jax.random.PRNGKey(0)
    kz, kx, kwc, kbc, kwl, kbl = jax.random.split(key, 6)

    z_f = jax.random.normal(kz, (B, C, Hz, Wz), dtype=jnp.float32)
    x_f = jax.random.normal(kx, (B, C, Hx, Wx), dtype=jnp.float32)

    # Deterministic synthetic head parameters (1x1 convs as (C, out) matrices).
    w_cls = 0.05 * jax.random.normal(kwc, (C, C_CLS), dtype=jnp.float32)
    b_cls = 0.01 * jax.random.normal(kbc, (1, C_CLS), dtype=jnp.float32)
    w_loc = 0.05 * jax.random.normal(kwl, (C, C_LOC), dtype=jnp.float32)
    b_loc = 0.01 * jax.random.normal(kbl, (1, C_LOC), dtype=jnp.float32)

    cls_out, loc_out = rpn_forward(z_f, x_f, w_cls, b_cls, w_loc, b_loc)
    jax.block_until_ready((cls_out, loc_out))

    cls_ref, loc_ref = _reference(z_f, x_f, w_cls, b_cls, w_loc, b_loc)
    assert cls_out.shape == (B, C_CLS, Hx - Hz + 1, Wx - Wz + 1)
    assert loc_out.shape == (B, C_LOC, Hx - Hz + 1, Wx - Wz + 1)
    assert jnp.allclose(cls_out, cls_ref, atol=1e-4, rtol=1e-4)
    assert jnp.allclose(loc_out, loc_ref, atol=1e-4, rtol=1e-4)

    print("KERNEL_OK")
</pallas_src>

<mosaic_0001>
module attributes {stable_mosaic.version = 11 : i64} {
  func.func @_rpn_kernel(%arg0: i32, %arg1: memref<2x32x16xf32, #tpu.memory_space<vmem>>, %arg2: memref<2x32x256xf32, #tpu.memory_space<vmem>>, %arg3: memref<32x32xf32, #tpu.memory_space<vmem>>, %arg4: memref<32x1xf32, #tpu.memory_space<vmem>>, %arg5: memref<2x32x128xf32, #tpu.memory_space<vmem>>) attributes {dimension_semantics = [#tpu.dimension_semantics<parallel>], iteration_bounds = array<i64: 1>, scalar_prefetch = 0 : i64, scratch_operands = 0 : i64, tpu.core_type = #tpu.core_type<tc>, window_params = [{transform_indices = @transform_0, window_bounds = array<i64: 2, 32, 16>}, {transform_indices = @transform_1, window_bounds = array<i64: 2, 32, 256>}, {pipeline_mode = #tpu.pipeline_mode<synchronous>, transform_indices = @transform_2, window_bounds = array<i64: 32, 32>}, {pipeline_mode = #tpu.pipeline_mode<synchronous>, transform_indices = @transform_3, window_bounds = array<i64: 32, 1>}, {transform_indices = @transform_4, window_bounds = array<i64: 2, 32, 128>}]} {
    %c0 = arith.constant 0 : index
    %c0_0 = arith.constant 0 : index
    %c0_1 = arith.constant 0 : index
    %0 = vector.load %arg2[%c0, %c0_0, %c0_1] : memref<2x32x256xf32, #tpu.memory_space<vmem>>, vector<2x32x256xf32>
    %c0_2 = arith.constant 0 : index
    %c0_3 = arith.constant 0 : index
    %c0_4 = arith.constant 0 : index
    %1 = vector.load %arg1[%c0_2, %c0_3, %c0_4] : memref<2x32x16xf32, #tpu.memory_space<vmem>>, vector<2x32x16xf32>
    %2 = vector.extract_strided_slice %1 {offsets = [0, 0, 0], sizes = [2, 32, 1], strides = [1, 1, 1]} : vector<2x32x16xf32> to vector<2x32x1xf32>
    %3 = vector.shape_cast %2 : vector<2x32x1xf32> to vector<2x32x1xf32>
    %4 = vector.broadcast %3 : vector<2x32x1xf32> to vector<2x32x128xf32>
    %5 = vector.extract_strided_slice %1 {offsets = [0, 0, 1], sizes = [2, 32, 1], strides = [1, 1, 1]} : vector<2x32x16xf32> to vector<2x32x1xf32>
    %6 = vector.shape_cast %5 : vector<2x32x1xf32> to vector<2x32x1xf32>
    %7 = vector.broadcast %6 : vector<2x32x1xf32> to vector<2x32x128xf32>
    %8 = vector.extract_strided_slice %1 {offsets = [0, 0, 2], sizes = [2, 32, 1], strides = [1, 1, 1]} : vector<2x32x16xf32> to vector<2x32x1xf32>
    %9 = vector.shape_cast %8 : vector<2x32x1xf32> to vector<2x32x1xf32>
    %10 = vector.broadcast %9 : vector<2x32x1xf32> to vector<2x32x128xf32>
    %11 = vector.extract_strided_slice %1 {offsets = [0, 0, 3], sizes = [2, 32, 1], strides = [1, 1, 1]} : vector<2x32x16xf32> to vector<2x32x1xf32>
    %12 = vector.shape_cast %11 : vector<2x32x1xf32> to vector<2x32x1xf32>
    %13 = vector.broadcast %12 : vector<2x32x1xf32> to vector<2x32x128xf32>
    %14 = vector.extract_strided_slice %1 {offsets = [0, 0, 4], sizes = [2, 32, 1], strides = [1, 1, 1]} : vector<2x32x16xf32> to vector<2x32x1xf32>
    %15 = vector.shape_cast %14 : vector<2x32x1xf32> to vector<2x32x1xf32>
    %16 = vector.broadcast %15 : vector<2x32x1xf32> to vector<2x32x128xf32>
    %17 = vector.extract_strided_slice %1 {offsets = [0, 0, 5], sizes = [2, 32, 1], strides = [1, 1, 1]} : vector<2x32x16xf32> to vector<2x32x1xf32>
    %18 = vector.shape_cast %17 : vector<2x32x1xf32> to vector<2x32x1xf32>
    %19 = vector.broadcast %18 : vector<2x32x1xf32> to vector<2x32x128xf32>
    %20 = vector.extract_strided_slice %1 {offsets = [0, 0, 6], sizes = [2, 32, 1], strides = [1, 1, 1]} : vector<2x32x16xf32> to vector<2x32x1xf32>
    %21 = vector.shape_cast %20 : vector<2x32x1xf32> to vector<2x32x1xf32>
    %22 = vector.broadcast %21 : vector<2x32x1xf32> to vector<2x32x128xf32>
    %23 = vector.extract_strided_slice %1 {offsets = [0, 0, 7], sizes = [2, 32, 1], strides = [1, 1, 1]} : vector<2x32x16xf32> to vector<2x32x1xf32>
    %24 = vector.shape_cast %23 : vector<2x32x1xf32> to vector<2x32x1xf32>
    %25 = vector.broadcast %24 : vector<2x32x1xf32> to vector<2x32x128xf32>
    %26 = vector.extract_strided_slice %1 {offsets = [0, 0, 8], sizes = [2, 32, 1], strides = [1, 1, 1]} : vector<2x32x16xf32> to vector<2x32x1xf32>
    %27 = vector.shape_cast %26 : vector<2x32x1xf32> to vector<2x32x1xf32>
    %28 = vector.broadcast %27 : vector<2x32x1xf32> to vector<2x32x128xf32>
    %29 = vector.extract_strided_slice %1 {offsets = [0, 0, 9], sizes = [2, 32, 1], strides = [1, 1, 1]} : vector<2x32x16xf32> to vector<2x32x1xf32>
    %30 = vector.shape_cast %29 : vector<2x32x1xf32> to vector<2x32x1xf32>
    %31 = vector.broadcast %30 : vector<2x32x1xf32> to vector<2x32x128xf32>
    %32 = vector.extract_strided_slice %1 {offsets = [0, 0, 10], sizes = [2, 32, 1], strides = [1, 1, 1]} : vector<2x32x16xf32> to vector<2x32x1xf32>
    %33 = vector.shape_cast %32 : vector<2x32x1xf32> to vector<2x32x1xf32>
    %34 = vector.broadcast %33 : vector<2x32x1xf32> to vector<2x32x128xf32>
    %35 = vector.extract_strided_slice %1 {offsets = [0, 0, 11], sizes = [2, 32, 1], strides = [1, 1, 1]} : vector<2x32x16xf32> to vector<2x32x1xf32>
    %36 = vector.shape_cast %35 : vector<2x32x1xf32> to vector<2x32x1xf32>
    %37 = vector.broadcast %36 : vector<2x32x1xf32> to vector<2x32x128xf32>
    %38 = vector.extract_strided_slice %1 {offsets = [0, 0, 12], sizes = [2, 32, 1], strides = [1, 1, 1]} : vector<2x32x16xf32> to vector<2x32x1xf32>
    %39 = vector.shape_cast %38 : vector<2x32x1xf32> to vector<2x32x1xf32>
    %40 = vector.broadcast %39 : vector<2x32x1xf32> to vector<2x32x128xf32>
    %41 = vector.extract_strided_slice %1 {offsets = [0, 0, 13], sizes = [2, 32, 1], strides = [1, 1, 1]} : vector<2x32x16xf32> to vector<2x32x1xf32>
    %42 = vector.shape_cast %41 : vector<2x32x1xf32> to vector<2x32x1xf32>
    %43 = vector.broadcast %42 : vector<2x32x1xf32> to vector<2x32x128xf32>
    %44 = vector.extract_strided_slice %1 {offsets = [0, 0, 14], sizes = [2, 32, 1], strides = [1, 1, 1]} : vector<2x32x16xf32> to vector<2x32x1xf32>
    %45 = vector.shape_cast %44 : vector<2x32x1xf32> to vector<2x32x1xf32>
    %46 = vector.broadcast %45 : vector<2x32x1xf32> to vector<2x32x128xf32>
    %47 = vector.extract_strided_slice %1 {offsets = [0, 0, 15], sizes = [2, 32, 1], strides = [1, 1, 1]} : vector<2x32x16xf32> to vector<2x32x1xf32>
    %48 = vector.shape_cast %47 : vector<2x32x1xf32> to vector<2x32x1xf32>
    %49 = vector.broadcast %48 : vector<2x32x1xf32> to vector<2x32x128xf32>
    %50 = vector.extract_strided_slice %0 {offsets = [0, 0, 0], sizes = [2, 32, 128], strides = [1, 1, 1]} : vector<2x32x256xf32> to vector<2x32x128xf32>
    %51 = arith.mulf %50, %4 : vector<2x32x128xf32>
    %52 = vector.extract_strided_slice %0 {offsets = [0, 0, 12], sizes = [2, 32, 128], strides = [1, 1, 1]} : vector<2x32x256xf32> to vector<2x32x128xf32>
    %53 = arith.mulf %52, %16 : vector<2x32x128xf32>
    %54 = arith.addf %51, %53 : vector<2x32x128xf32>
    %55 = vector.extract_strided_slice %0 {offsets = [0, 0, 24], sizes = [2, 32, 128], strides = [1, 1, 1]} : vector<2x32x256xf32> to vector<2x32x128xf32>
    %56 = arith.mulf %55, %28 : vector<2x32x128xf32>
    %57 = arith.addf %54, %56 : vector<2x32x128xf32>
    %58 = vector.extract_strided_slice %0 {offsets = [0, 0, 36], sizes = [2, 32, 128], strides = [1, 1, 1]} : vector<2x32x256xf32> to vector<2x32x128xf32>
    %59 = arith.mulf %58, %40 : vector<2x32x128xf32>
    %60 = arith.addf %57, %59 : vector<2x32x128xf32>
    %61 = vector.extract_strided_slice %0 {offsets = [0, 0, 1], sizes = [2, 32, 128], strides = [1, 1, 1]} : vector<2x32x256xf32> to vector<2x32x128xf32>
    %62 = arith.mulf %61, %7 : vector<2x32x128xf32>
    %63 = vector.extract_strided_slice %0 {offsets = [0, 0, 13], sizes = [2, 32, 128], strides = [1, 1, 1]} : vector<2x32x256xf32> to vector<2x32x128xf32>
    %64 = arith.mulf %63, %19 : vector<2x32x128xf32>
    %65 = arith.addf %62, %64 : vector<2x32x128xf32>
    %66 = vector.extract_strided_slice %0 {offsets = [0, 0, 25], sizes = [2, 32, 128], strides = [1, 1, 1]} : vector<2x32x256xf32> to vector<2x32x128xf32>
    %67 = arith.mulf %66, %31 : vector<2x32x128xf32>
    %68 = arith.addf %65, %67 : vector<2x32x128xf32>
    %69 = vector.extract_strided_slice %0 {offsets = [0, 0, 37], sizes = [2, 32, 128], strides = [1, 1, 1]} : vector<2x32x256xf32> to vector<2x32x128xf32>
    %70 = arith.mulf %69, %43 : vector<2x32x128xf32>
    %71 = arith.addf %68, %70 : vector<2x32x128xf32>
    %72 = vector.extract_strided_slice %0 {offsets = [0, 0, 2], sizes = [2, 32, 128], strides = [1, 1, 1]} : vector<2x32x256xf32> to vector<2x32x128xf32>
    %73 = arith.mulf %72, %10 : vector<2x32x128xf32>
    %74 = vector.extract_strided_slice %0 {offsets = [0, 0, 14], sizes = [2, 32, 128], strides = [1, 1, 1]} : vector<2x32x256xf32> to vector<2x32x128xf32>
    %75 = arith.mulf %74, %22 : vector<2x32x128xf32>
    %76 = arith.addf %73, %75 : vector<2x32x128xf32>
    %77 = vector.extract_strided_slice %0 {offsets = [0, 0, 26], sizes = [2, 32, 128], strides = [1, 1, 1]} : vector<2x32x256xf32> to vector<2x32x128xf32>
    %78 = arith.mulf %77, %34 : vector<2x32x128xf32>
    %79 = arith.addf %76, %78 : vector<2x32x128xf32>
    %80 = vector.extract_strided_slice %0 {offsets = [0, 0, 38], sizes = [2, 32, 128], strides = [1, 1, 1]} : vector<2x32x256xf32> to vector<2x32x128xf32>
    %81 = arith.mulf %80, %46 : vector<2x32x128xf32>
    %82 = arith.addf %79, %81 : vector<2x32x128xf32>
    %83 = vector.extract_strided_slice %0 {offsets = [0, 0, 3], sizes = [2, 32, 128], strides = [1, 1, 1]} : vector<2x32x256xf32> to vector<2x32x128xf32>
    %84 = arith.mulf %83, %13 : vector<2x32x128xf32>
    %85 = vector.extract_strided_slice %0 {offsets = [0, 0, 15], sizes = [2, 32, 128], strides = [1, 1, 1]} : vector<2x32x256xf32> to vector<2x32x128xf32>
    %86 = arith.mulf %85, %25 : vector<2x32x128xf32>
    %87 = arith.addf %84, %86 : vector<2x32x128xf32>
    %88 = vector.extract_strided_slice %0 {offsets = [0, 0, 27], sizes = [2, 32, 128], strides = [1, 1, 1]} : vector<2x32x256xf32> to vector<2x32x128xf32>
    %89 = arith.mulf %88, %37 : vector<2x32x128xf32>
    %90 = arith.addf %87, %89 : vector<2x32x128xf32>
    %91 = vector.extract_strided_slice %0 {offsets = [0, 0, 39], sizes = [2, 32, 128], strides = [1, 1, 1]} : vector<2x32x256xf32> to vector<2x32x128xf32>
    %92 = arith.mulf %91, %49 : vector<2x32x128xf32>
    %93 = arith.addf %90, %92 : vector<2x32x128xf32>
    %94 = arith.addf %60, %71 : vector<2x32x128xf32>
    %95 = arith.addf %82, %93 : vector<2x32x128xf32>
    %96 = arith.addf %94, %95 : vector<2x32x128xf32>
    %c0_5 = arith.constant 0 : index
    %c0_6 = arith.constant 0 : index
    %97 = vector.load %arg3[%c0_5, %c0_6] : memref<32x32xf32, #tpu.memory_space<vmem>>, vector<32x32xf32>
    %c0_7 = arith.constant 0 : index
    %c0_8 = arith.constant 0 : index
    %98 = vector.load %arg4[%c0_7, %c0_8] : memref<32x1xf32, #tpu.memory_space<vmem>>, vector<32x1xf32>
    %99 = vector.extract_strided_slice %96 {offsets = [0, 0, 0], sizes = [1, 32, 128], strides = [1, 1, 1]} : vector<2x32x128xf32> to vector<1x32x128xf32>
    %100 = vector.shape_cast %99 : vector<1x32x128xf32> to vector<32x128xf32>
    %cst = arith.constant dense<0.000000e+00> : vector<32x128xf32>
    %101 = tpu.matmul %97, %100, %cst {dimension_numbers = #tpu.dot_dimension_numbers<[1], [0], [0], [1], [0, 0, 1, 1], [], []>} : vector<32x32xf32>, vector<32x128xf32>, vector<32x128xf32> -> vector<32x128xf32>
    %102 = vector.broadcast %98 : vector<32x1xf32> to vector<32x128xf32>
    %103 = arith.addf %101, %102 : vector<32x128xf32>
    %c0_9 = arith.constant 0 : index
    %c0_10 = arith.constant 0 : index
    %c0_11 = arith.constant 0 : index
    %104 = vector.load %arg5[%c0_9, %c0_10, %c0_11] : memref<2x32x128xf32, #tpu.memory_space<vmem>>, vector<1x32x128xf32>
    %105 = vector.shape_cast %104 : vector<1x32x128xf32> to vector<32x128xf32>
    %106 = vector.shape_cast %103 : vector<32x128xf32> to vector<1x32x128xf32>
    tpu.vector_store %arg5[%c0_9, %c0_10, %c0_11], %106 {strides = array<i32>} : memref<2x32x128xf32, #tpu.memory_space<vmem>>, vector<1x32x128xf32>,
    %107 = vector.extract_strided_slice %96 {offsets = [1, 0, 0], sizes = [1, 32, 128], strides = [1, 1, 1]} : vector<2x32x128xf32> to vector<1x32x128xf32>
    %108 = vector.shape_cast %107 : vector<1x32x128xf32> to vector<32x128xf32>
    %cst_12 = arith.constant dense<0.000000e+00> : vector<32x128xf32>
    %109 = tpu.matmul %97, %108, %cst_12 {dimension_numbers = #tpu.dot_dimension_numbers<[1], [0], [0], [1], [0, 0, 1, 1], [], []>} : vector<32x32xf32>, vector<32x128xf32>, vector<32x128xf32> -> vector<32x128xf32>
    %110 = vector.broadcast %98 : vector<32x1xf32> to vector<32x128xf32>
    %111 = arith.addf %109, %110 : vector<32x128xf32>
    %c1 = arith.constant 1 : index
    %c0_13 = arith.constant 0 : index
    %c0_14 = arith.constant 0 : index
    %112 = vector.load %arg5[%c1, %c0_13, %c0_14] : memref<2x32x128xf32, #tpu.memory_space<vmem>>, vector<1x32x128xf32>
    %113 = vector.shape_cast %112 : vector<1x32x128xf32> to vector<32x128xf32>
    %114 = vector.shape_cast %111 : vector<32x128xf32> to vector<1x32x128xf32>
    tpu.vector_store %arg5[%c1, %c0_13, %c0_14], %114 {strides = array<i32>} : memref<2x32x128xf32, #tpu.memory_space<vmem>>, vector<1x32x128xf32>,
    return
  }
  func.func @transform_0(%arg0: i32) -> (i32, i32, i32) {
    %c0_i32 = arith.constant 0 : i32
    %c0_i32_0 = arith.constant 0 : i32
    %c0_i32_1 = arith.constant 0 : i32
    return %arg0, %c0_i32, %c0_i32_0 : i32, i32, i32
  }
  func.func @transform_1(%arg0: i32) -> (i32, i32, i32) {
    %c0_i32 = arith.constant 0 : i32
    %c0_i32_0 = arith.constant 0 : i32
    %c0_i32_1 = arith.constant 0 : i32
    return %arg0, %c0_i32, %c0_i32_0 : i32, i32, i32
  }
  func.func @transform_2(%arg0: i32) -> (i32, i32) {
    %c0_i32 = arith.constant 0 : i32
    %c0_i32_0 = arith.constant 0 : i32
    %c0_i32_1 = arith.constant 0 : i32
    return %c0_i32, %c0_i32_0 : i32, i32
  }
  func.func @transform_3(%arg0: i32) -> (i32, i32) {
    %c0_i32 = arith.constant 0 : i32
    %c0_i32_0 = arith.constant 0 : i32
    %c0_i32_1 = arith.constant 0 : i32
    return %c0_i32, %c0_i32_0 : i32, i32
  }
  func.func @transform_4(%arg0: i32) -> (i32, i32, i32) {
    %c0_i32 = arith.constant 0 : i32
    %c0_i32_0 = arith.constant 0 : i32
    %c0_i32_1 = arith.constant 0 : i32
    return %arg0, %c0_i32, %c0_i32_0 : i32, i32, i32
  }
}

</mosaic_0001>

<llo_original>
// kernel: tpu_custom_call.1
$region0: #{tpu_custom_call.1}
  #allocation0 [shape = 'u32[]', space=smem, size = 0x4, offset = 0x4, fixed_abs, tag = 'smem constant byte address 0x4 - core index']
  #allocation1 [shape = 'u32[144,128]{1,0:T(1,128)}', space=vmem, size = 0x12000, scoped, tag = 'internal scratch']
  %s0 = inlined_call_operand.vmem [shape: f32[2,32,16], index: 0, kind: input, shape index: {}]
  %s1 = inlined_call_operand.vmem [shape: f32[2,32,256], index: 1, kind: input, shape index: {}]
  %s2 = inlined_call_operand.hbm [shape: f32[32,32], index: 2, kind: input, shape index: {}]
  %s3 = inlined_call_operand.vmem [shape: f32[32,1], index: 3, kind: input, shape index: {}]
  %s4 = inlined_call_operand.hbm [shape: f32[2,32,128], index: 4, kind: output, shape index: {}]
  %s5 = sld [smem:[#allocation0]]
  $region30: #{tpu_custom_call.1} parent=0
    _
  %s7 = ssub.s32 1, %s5
  %s8 = scalar_select 0, %s7, %s5
  $region1: #{tpu_custom_call.1} parent=0
    #allocation2 [shape = 'u8[16384]{0}', space=vmem, size = 0x4000, scoped, tag = 'input window, operand 2, single buffered']
    #allocation3 [shape = 's32[1]{0}', space=sflag, size = 0x4, scoped, tag = 'scoped memory for tpu_custom_call.1']
    #allocation4 [shape = 's32[1]{0}', space=sflag, size = 0x4, scoped, tag = 'scoped memory for tpu_custom_call.1']
    #allocation5 [shape = 'u8[32768]{0}', space=vmem, size = 0x8000, scoped, tag = 'output window, operand 0, single buffered']
    %9 = vsyncpa [#allocation3], 0
    %10 = vsyncpa [#allocation4], 0
    // Predicated region
    $region2: #{tpu_custom_call.1} parent=1 // pred_check
      _
    $region3: #{tpu_custom_call.1} parent=1 // pred_check_branch
      %12 = sbr.rel (0) target = $region5
    $region4: #{tpu_custom_call.1} parent=1 // pred_region
      _
    $region5: #{tpu_custom_call.1} parent=1 // pred_fallthru
      _
    // Predicated region
    $region6: #{tpu_custom_call.1} parent=1 // pred_check
      _
    $region7: #{tpu_custom_call.1} parent=1 // pred_check_branch
      %14 = sbr.rel (0) target = $region9
    $region8: #{tpu_custom_call.1} parent=1 // pred_region
      _
    $region9: #{tpu_custom_call.1} parent=1 // pred_fallthru
      _
    // Predicated region
    $region10: #{tpu_custom_call.1} parent=1 // pred_check
      _
    $region11: #{tpu_custom_call.1} parent=1 // pred_check_branch
      %16 = sbr.rel (0) target = $region13
    $region12: #{tpu_custom_call.1} parent=1 // pred_region
      %s18 = ssub.s32 512, 512
      %19 = vsyncadd [#allocation3], %s18
      %s20 = sshll.u32 [#allocation2], 4
      %s21 = int_to_ptr.vmem [resolvable:$true] %s20
      %26 = dma.hbm_to_vmem [thread:$0]  %s2, 512, %s21, [#allocation3], 128, 128, 8
    $region13: #{tpu_custom_call.1} parent=1 // pred_fallthru
      _
    // Predicated region
    $region14: #{tpu_custom_call.1} parent=1 // pred_check
      _
    $region15: #{tpu_custom_call.1} parent=1 // pred_check_branch
      %28 = sbr.rel (0) target = $region17
    $region16: #{tpu_custom_call.1} parent=1 // pred_region
      _
    $region17: #{tpu_custom_call.1} parent=1 // pred_fallthru
      _
    // Predicated region
    $region18: #{tpu_custom_call.1} parent=1 // pred_check
      _
    $region19: #{tpu_custom_call.1} parent=1 // pred_check_branch
      %30 = sbr.rel (0) target = $region21
    $region20: #{tpu_custom_call.1} parent=1 // pred_region
      %31 = dma.done [#allocation3], 512
    $region21: #{tpu_custom_call.1} parent=1 // pred_fallthru
      _
    %v32 = vld [vmem:[%s1] sm:$0xff]
    %v33 = vld [vmem:[%s1 + $0x8] sm:$0xff]
    %v34 = vld [vmem:[%s1 + $0x10] sm:$0xff]
    %v35 = vld [vmem:[%s1 + $0x18] sm:$0xff]
    %v36 = vld [vmem:[%s1 + $0x20] sm:$0xff]
    %v37 = vld [vmem:[%s1 + $0x28] sm:$0xff]
    %v38 = vld [vmem:[%s1 + $0x30] sm:$0xff]
    %v39 = vld [vmem:[%s1 + $0x38] sm:$0xff]
    %v40 = vld [vmem:[%s1 + $0x40] sm:$0xff]
    %v41 = vld [vmem:[%s1 + $0x48] sm:$0xff]
    %v42 = vld [vmem:[%s1 + $0x50] sm:$0xff]
    %v43 = vld [vmem:[%s1 + $0x58] sm:$0xff]
    %v44 = vld [vmem:[%s1 + $0x60] sm:$0xff]
    %v45 = vld [vmem:[%s1 + $0x68] sm:$0xff]
    %v46 = vld [vmem:[%s1 + $0x70] sm:$0xff]
    %v47 = vld [vmem:[%s1 + $0x78] sm:$0xff]
    %v48 = vld [vmem:[%s0] sm:$0xff]
    %v49 = vld [vmem:[%s0 + $0x8] sm:$0xff]
    %v50 = vld [vmem:[%s0 + $0x10] sm:$0xff]
    %v51 = vld [vmem:[%s0 + $0x18] sm:$0xff]
    %v52 = vld [vmem:[%s0 + $0x20] sm:$0xff]
    %v53 = vld [vmem:[%s0 + $0x28] sm:$0xff]
    %v54 = vld [vmem:[%s0 + $0x30] sm:$0xff]
    %v55 = vld [vmem:[%s0 + $0x38] sm:$0xff]
    %57 = vset.pattern.permute.xlu0 0
    %58 = vperm.xlu0 %57, %v48
    %v59 = vpop.permute.xlu0 %58
    %62 = vset.pattern.permute.xlu0 0
    %63 = vperm.xlu0 %62, %v49
    %v64 = vpop.permute.xlu0 %63
    %67 = vset.pattern.permute.xlu0 0
    %68 = vperm.xlu0 %67, %v50
    %v69 = vpop.permute.xlu0 %68
    %72 = vset.pattern.permute.xlu0 0
    %73 = vperm.xlu0 %72, %v51
    %v74 = vpop.permute.xlu0 %73
    %77 = vset.pattern.permute.xlu0 0
    %78 = vperm.xlu0 %77, %v52
    %v79 = vpop.permute.xlu0 %78
    %82 = vset.pattern.permute.xlu0 0
    %83 = vperm.xlu0 %82, %v53
    %v84 = vpop.permute.xlu0 %83
    %87 = vset.pattern.permute.xlu0 0
    %88 = vperm.xlu0 %87, %v54
    %v89 = vpop.permute.xlu0 %88
    %92 = vset.pattern.permute.xlu0 0
    %93 = vperm.xlu0 %92, %v55
    %v94 = vpop.permute.xlu0 %93
    %96 = vset.pattern.permute.xlu0 1
    %97 = vperm.xlu0 %96, %v48
    %v98 = vpop.permute.xlu0 %97
    %100 = vset.pattern.permute.xlu0 1
    %101 = vperm.xlu0 %100, %v49
    %v102 = vpop.permute.xlu0 %101
    %104 = vset.pattern.permute.xlu0 1
    %105 = vperm.xlu0 %104, %v50
    %v106 = vpop.permute.xlu0 %105
    %108 = vset.pattern.permute.xlu0 1
    %109 = vperm.xlu0 %108, %v51
    %v110 = vpop.permute.xlu0 %109
    %112 = vset.pattern.permute.xlu0 1
    %113 = vperm.xlu0 %112, %v52
    %v114 = vpop.permute.xlu0 %113
    %116 = vset.pattern.permute.xlu0 1
    %117 = vperm.xlu0 %116, %v53
    %v118 = vpop.permute.xlu0 %117
    %120 = vset.pattern.permute.xlu0 1
    %121 = vperm.xlu0 %120, %v54
    %v122 = vpop.permute.xlu0 %121
    %124 = vset.pattern.permute.xlu0 1
    %125 = vperm.xlu0 %124, %v55
    %v126 = vpop.permute.xlu0 %125
    %128 = vset.pattern.permute.xlu0 2
    %129 = vperm.xlu0 %128, %v48
    %v130 = vpop.permute.xlu0 %129
    %132 = vset.pattern.permute.xlu0 2
    %133 = vperm.xlu0 %132, %v49
    %v134 = vpop.permute.xlu0 %133
    %136 = vset.pattern.permute.xlu0 2
    %137 = vperm.xlu0 %136, %v50
    %v138 = vpop.permute.xlu0 %137
    %140 = vset.pattern.permute.xlu0 2
    %141 = vperm.xlu0 %140, %v51
    %v142 = vpop.permute.xlu0 %141
    %144 = vset.pattern.permute.xlu0 2
    %145 = vperm.xlu0 %144, %v52
    %v146 = vpop.permute.xlu0 %145
    %148 = vset.pattern.permute.xlu0 2
    %149 = vperm.xlu0 %148, %v53
    %v150 = vpop.permute.xlu0 %149
    %152 = vset.pattern.permute.xlu0 2
    %153 = vperm.xlu0 %152, %v54
    %v154 = vpop.permute.xlu0 %153
    %156 = vset.pattern.permute.xlu0 2
    %157 = vperm.xlu0 %156, %v55
    %v158 = vpop.permute.xlu0 %157
    %160 = vset.pattern.permute.xlu0 3
    %161 = vperm.xlu0 %160, %v48
    %v162 = vpop.permute.xlu0 %161
    %164 = vset.pattern.permute.xlu0 3
    %165 = vperm.xlu0 %164, %v49
    %v166 = vpop.permute.xlu0 %165
    %168 = vset.pattern.permute.xlu0 3
    %169 = vperm.xlu0 %168, %v50
    %v170 = vpop.permute.xlu0 %169
    %172 = vset.pattern.permute.xlu0 3
    %173 = vperm.xlu0 %172, %v51
    %v174 = vpop.permute.xlu0 %173
    %176 = vset.pattern.permute.xlu0 3
    %177 = vperm.xlu0 %176, %v52
    %v178 = vpop.permute.xlu0 %177
    %180 = vset.pattern.permute.xlu0 3
    %181 = vperm.xlu0 %180, %v53
    %v182 = vpop.permute.xlu0 %181
    %184 = vset.pattern.permute.xlu0 3
    %185 = vperm.xlu0 %184, %v54
    %v186 = vpop.permute.xlu0 %185
    %188 = vset.pattern.permute.xlu0 3
    %189 = vperm.xlu0 %188, %v55
    %v190 = vpop.permute.xlu0 %189
    %192 = vset.pattern.permute.xlu0 4
    %193 = vperm.xlu0 %192, %v48
    %v194 = vpop.permute.xlu0 %193
    %196 = vset.pattern.permute.xlu0 4
    %197 = vperm.xlu0 %196, %v49
    %v198 = vpop.permute.xlu0 %197
    %200 = vset.pattern.permute.xlu0 4
    %201 = vperm.xlu0 %200, %v50
    %v202 = vpop.permute.xlu0 %201
    %204 = vset.pattern.permute.xlu0 4
    %205 = vperm.xlu0 %204, %v51
    %v206 = vpop.permute.xlu0 %205
    %208 = vset.pattern.permute.xlu0 4
    %209 = vperm.xlu0 %208, %v52
    %v210 = vpop.permute.xlu0 %209
    %212 = vset.pattern.permute.xlu0 4
    %213 = vperm.xlu0 %212, %v53
    %v214 = vpop.permute.xlu0 %213
    %216 = vset.pattern.permute.xlu0 4
    %217 = vperm.xlu0 %216, %v54
    %v218 = vpop.permute.xlu0 %217
    %220 = vset.pattern.permute.xlu0 4
    %221 = vperm.xlu0 %220, %v55
    %v222 = vpop.permute.xlu0 %221
    %224 = vset.pattern.permute.xlu0 5
    %225 = vperm.xlu0 %224, %v48
    %v226 = vpop.permute.xlu0 %225
    %228 = vset.pattern.permute.xlu0 5
    %229 = vperm.xlu0 %228, %v49
    %v230 = vpop.permute.xlu0 %229
    %232 = vset.pattern.permute.xlu0 5
    %233 = vperm.xlu0 %232, %v50
    %v234 = vpop.permute.xlu0 %233
    %236 = vset.pattern.permute.xlu0 5
    %237 = vperm.xlu0 %236, %v51
    %v238 = vpop.permute.xlu0 %237
    %240 = vset.pattern.permute.xlu0 5
    %241 = vperm.xlu0 %240, %v52
    %v242 = vpop.permute.xlu0 %241
    %244 = vset.pattern.permute.xlu0 5
    %245 = vperm.xlu0 %244, %v53
    %v246 = vpop.permute.xlu0 %245
    %248 = vset.pattern.permute.xlu0 5
    %249 = vperm.xlu0 %248, %v54
    %v250 = vpop.permute.xlu0 %249
    %252 = vset.pattern.permute.xlu0 5
    %253 = vperm.xlu0 %252, %v55
    %v254 = vpop.permute.xlu0 %253
    %256 = vset.pattern.permute.xlu0 6
    %257 = vperm.xlu0 %256, %v48
    %v258 = vpop.permute.xlu0 %257
    %260 = vset.pattern.permute.xlu0 6
    %261 = vperm.xlu0 %260, %v49
    %v262 = vpop.permute.xlu0 %261
    %264 = vset.pattern.permute.xlu0 6
    %265 = vperm.xlu0 %264, %v50
    %v266 = vpop.permute.xlu0 %265
    %268 = vset.pattern.permute.xlu0 6
    %269 = vperm.xlu0 %268, %v51
    %v270 = vpop.permute.xlu0 %269
    %272 = vset.pattern.permute.xlu0 6
    %273 = vperm.xlu0 %272, %v52
    %v274 = vpop.permute.xlu0 %273
    %276 = vset.pattern.permute.xlu0 6
    %277 = vperm.xlu0 %276, %v53
    %v278 = vpop.permute.xlu0 %277
    %280 = vset.pattern.permute.xlu0 6
    %281 = vperm.xlu0 %280, %v54
    %v282 = vpop.permute.xlu0 %281
    %284 = vset.pattern.permute.xlu0 6
    %285 = vperm.xlu0 %284, %v55
    %v286 = vpop.permute.xlu0 %285
    %288 = vset.pattern.permute.xlu0 7
    %289 = vperm.xlu0 %288, %v48
    %v290 = vpop.permute.xlu0 %289
    %292 = vset.pattern.permute.xlu0 7
    %293 = vperm.xlu0 %292, %v49
    %v294 = vpop.permute.xlu0 %293
    %296 = vset.pattern.permute.xlu0 7
    %297 = vperm.xlu0 %296, %v50
    %v298 = vpop.permute.xlu0 %297
    %300 = vset.pattern.permute.xlu0 7
    %301 = vperm.xlu0 %300, %v51
    %v302 = vpop.permute.xlu0 %301
    %304 = vset.pattern.permute.xlu0 7
    %305 = vperm.xlu0 %304, %v52
    %v306 = vpop.permute.xlu0 %305
    %308 = vset.pattern.permute.xlu0 7
    %309 = vperm.xlu0 %308, %v53
    %v310 = vpop.permute.xlu0 %309
    %312 = vset.pattern.permute.xlu0 7
    %313 = vperm.xlu0 %312, %v54
    %v314 = vpop.permute.xlu0 %313
    %316 = vset.pattern.permute.xlu0 7
    %317 = vperm.xlu0 %316, %v55
    %v318 = vpop.permute.xlu0 %317
    %320 = vset.pattern.permute.xlu0 8
    %321 = vperm.xlu0 %320, %v48
    %v322 = vpop.permute.xlu0 %321
    %324 = vset.pattern.permute.xlu0 8
    %325 = vperm.xlu0 %324, %v49
    %v326 = vpop.permute.xlu0 %325
    %328 = vset.pattern.permute.xlu0 8
    %329 = vperm.xlu0 %328, %v50
    %v330 = vpop.permute.xlu0 %329
    %332 = vset.pattern.permute.xlu0 8
    %333 = vperm.xlu0 %332, %v51
    %v334 = vpop.permute.xlu0 %333
    %336 = vset.pattern.permute.xlu0 8
    %337 = vperm.xlu0 %336, %v52
    %v338 = vpop.permute.xlu0 %337
    %340 = vset.pattern.permute.xlu0 8
    %341 = vperm.xlu0 %340, %v53
    %v342 = vpop.permute.xlu0 %341
    %344 = vset.pattern.permute.xlu0 8
    %345 = vperm.xlu0 %344, %v54
    %v346 = vpop.permute.xlu0 %345
    %348 = vset.pattern.permute.xlu0 8
    %349 = vperm.xlu0 %348, %v55
    %v350 = vpop.permute.xlu0 %349
    %352 = vset.pattern.permute.xlu0 9
    %353 = vperm.xlu0 %352, %v48
    %v354 = vpop.permute.xlu0 %353
    %356 = vset.pattern.permute.xlu0 9
    %357 = vperm.xlu0 %356, %v49
    %v358 = vpop.permute.xlu0 %357
    %360 = vset.pattern.permute.xlu0 9
    %361 = vperm.xlu0 %360, %v50
    %v362 = vpop.permute.xlu0 %361
    %364 = vset.pattern.permute.xlu0 9
    %365 = vperm.xlu0 %364, %v51
    %v366 = vpop.permute.xlu0 %365
    %368 = vset.pattern.permute.xlu0 9
    %369 = vperm.xlu0 %368, %v52
    %v370 = vpop.permute.xlu0 %369
    %372 = vset.pattern.permute.xlu0 9
    %373 = vperm.xlu0 %372, %v53
    %v374 = vpop.permute.xlu0 %373
    %376 = vset.pattern.permute.xlu0 9
    %377 = vperm.xlu0 %376, %v54
    %v378 = vpop.permute.xlu0 %377
    %380 = vset.pattern.permute.xlu0 9
    %381 = vperm.xlu0 %380, %v55
    %v382 = vpop.permute.xlu0 %381
    %384 = vset.pattern.permute.xlu0 10
    %385 = vperm.xlu0 %384, %v48
    %v386 = vpop.permute.xlu0 %385
    %388 = vset.pattern.permute.xlu0 10
    %389 = vperm.xlu0 %388, %v49
    %v390 = vpop.permute.xlu0 %389
    %392 = vset.pattern.permute.xlu0 10
    %393 = vperm.xlu0 %392, %v50
    %v394 = vpop.permute.xlu0 %393
    %396 = vset.pattern.permute.xlu0 10
    %397 = vperm.xlu0 %396, %v51
    %v398 = vpop.permute.xlu0 %397
    %400 = vset.pattern.permute.xlu0 10
    %401 = vperm.xlu0 %400, %v52
    %v402 = vpop.permute.xlu0 %401
    %404 = vset.pattern.permute.xlu0 10
    %405 = vperm.xlu0 %404, %v53
    %v406 = vpop.permute.xlu0 %405
    %408 = vset.pattern.permute.xlu0 10
    %409 = vperm.xlu0 %408, %v54
    %v410 = vpop.permute.xlu0 %409
    %412 = vset.pattern.permute.xlu0 10
    %413 = vperm.xlu0 %412, %v55
    %v414 = vpop.permute.xlu0 %413
    %416 = vset.pattern.permute.xlu0 11
    %417 = vperm.xlu0 %416, %v48
    %v418 = vpop.permute.xlu0 %417
    %420 = vset.pattern.permute.xlu0 11
    %421 = vperm.xlu0 %420, %v49
    %v422 = vpop.permute.xlu0 %421
    %424 = vset.pattern.permute.xlu0 11
    %425 = vperm.xlu0 %424, %v50
    %v426 = vpop.permute.xlu0 %425
    %428 = vset.pattern.permute.xlu0 11
    %429 = vperm.xlu0 %428, %v51
    %v430 = vpop.permute.xlu0 %429
    %432 = vset.pattern.permute.xlu0 11
    %433 = vperm.xlu0 %432, %v52
    %v434 = vpop.permute.xlu0 %433
    %436 = vset.pattern.permute.xlu0 11
    %437 = vperm.xlu0 %436, %v53
    %v438 = vpop.permute.xlu0 %437
    %440 = vset.pattern.permute.xlu0 11
    %441 = vperm.xlu0 %440, %v54
    %v442 = vpop.permute.xlu0 %441
    %444 = vset.pattern.permute.xlu0 11
    %445 = vperm.xlu0 %444, %v55
    %v446 = vpop.permute.xlu0 %445
    %448 = vset.pattern.permute.xlu0 12
    %449 = vperm.xlu0 %448, %v48
    %v450 = vpop.permute.xlu0 %449
    %452 = vset.pattern.permute.xlu0 12
    %453 = vperm.xlu0 %452, %v49
    %v454 = vpop.permute.xlu0 %453
    %456 = vset.pattern.permute.xlu0 12
    %457 = vperm.xlu0 %456, %v50
    %v458 = vpop.permute.xlu0 %457
    %460 = vset.pattern.permute.xlu0 12
    %461 = vperm.xlu0 %460, %v51
    %v462 = vpop.permute.xlu0 %461
    %464 = vset.pattern.permute.xlu0 12
    %465 = vperm.xlu0 %464, %v52
    %v466 = vpop.permute.xlu0 %465
    %468 = vset.pattern.permute.xlu0 12
    %469 = vperm.xlu0 %468, %v53
    %v470 = vpop.permute.xlu0 %469
    %472 = vset.pattern.permute.xlu0 12
    %473 = vperm.xlu0 %472, %v54
    %v474 = vpop.permute.xlu0 %473
    %476 = vset.pattern.permute.xlu0 12
    %477 = vperm.xlu0 %476, %v55
    %v478 = vpop.permute.xlu0 %477
    %480 = vset.pattern.permute.xlu0 13
    %481 = vperm.xlu0 %480, %v48
    %v482 = vpop.permute.xlu0 %481
    %484 = vset.pattern.permute.xlu0 13
    %485 = vperm.xlu0 %484, %v49
    %v486 = vpop.permute.xlu0 %485
    %488 = vset.pattern.permute.xlu0 13
    %489 = vperm.xlu0 %488, %v50
    %v490 = vpop.permute.xlu0 %489
    %492 = vset.pattern.permute.xlu0 13
    %493 = vperm.xlu0 %492, %v51
    %v494 = vpop.permute.xlu0 %493
    %496 = vset.pattern.permute.xlu0 13
    %497 = vperm.xlu0 %496, %v52
    %v498 = vpop.permute.xlu0 %497
    %500 = vset.pattern.permute.xlu0 13
    %501 = vperm.xlu0 %500, %v53
    %v502 = vpop.permute.xlu0 %501
    %504 = vset.pattern.permute.xlu0 13
    %505 = vperm.xlu0 %504, %v54
    %v506 = vpop.permute.xlu0 %505
    %508 = vset.pattern.permute.xlu0 13
    %509 = vperm.xlu0 %508, %v55
    %v510 = vpop.permute.xlu0 %509
    %512 = vset.pattern.permute.xlu0 14
    %513 = vperm.xlu0 %512, %v48
    %v514 = vpop.permute.xlu0 %513
    %516 = vset.pattern.permute.xlu0 14
    %517 = vperm.xlu0 %516, %v49
    %v518 = vpop.permute.xlu0 %517
    %520 = vset.pattern.permute.xlu0 14
    %521 = vperm.xlu0 %520, %v50
    %v522 = vpop.permute.xlu0 %521
    %524 = vset.pattern.permute.xlu0 14
    %525 = vperm.xlu0 %524, %v51
    %v526 = vpop.permute.xlu0 %525
    %528 = vset.pattern.permute.xlu0 14
    %529 = vperm.xlu0 %528, %v52
    %v530 = vpop.permute.xlu0 %529
    %532 = vset.pattern.permute.xlu0 14
    %533 = vperm.xlu0 %532, %v53
    %v534 = vpop.permute.xlu0 %533
    %536 = vset.pattern.permute.xlu0 14
    %537 = vperm.xlu0 %536, %v54
    %v538 = vpop.permute.xlu0 %537
    %540 = vset.pattern.permute.xlu0 14
    %541 = vperm.xlu0 %540, %v55
    %v542 = vpop.permute.xlu0 %541
    %544 = vset.pattern.permute.xlu0 15
    %545 = vperm.xlu0 %544, %v48
    %v546 = vpop.permute.xlu0 %545
    %548 = vset.pattern.permute.xlu0 15
    %549 = vperm.xlu0 %548, %v49
    %v550 = vpop.permute.xlu0 %549
    %552 = vset.pattern.permute.xlu0 15
    %553 = vperm.xlu0 %552, %v50
    %v554 = vpop.permute.xlu0 %553
    %556 = vset.pattern.permute.xlu0 15
    %557 = vperm.xlu0 %556, %v51
    %v558 = vpop.permute.xlu0 %557
    %560 = vset.pattern.permute.xlu0 15
    %561 = vperm.xlu0 %560, %v52
    %v562 = vpop.permute.xlu0 %561
    %564 = vset.pattern.permute.xlu0 15
    %565 = vperm.xlu0 %564, %v53
    %v566 = vpop.permute.xlu0 %565
    %568 = vset.pattern.permute.xlu0 15
    %569 = vperm.xlu0 %568, %v54
    %v570 = vpop.permute.xlu0 %569
    %572 = vset.pattern.permute.xlu0 15
    %573 = vperm.xlu0 %572, %v55
    %v574 = vpop.permute.xlu0 %573
    %v576 = vmul.f32 %v32, %v59
    %v577 = vmul.f32 %v34, %v64
    %v578 = vmul.f32 %v36, %v69
    %v579 = vmul.f32 %v38, %v74
    %v580 = vmul.f32 %v40, %v79
    %v581 = vmul.f32 %v42, %v84
    %v582 = vmul.f32 %v44, %v89
    %v583 = vmul.f32 %v46, %v94
    %v584 = vmul.f32 %v32, %v194
    %v585 = vmul.f32 %v33, %v194
    %v586 = vmul.f32 %v34, %v198
    %v587 = vmul.f32 %v35, %v198
    %v588 = vmul.f32 %v36, %v202
    %v589 = vmul.f32 %v37, %v202
    %v590 = vmul.f32 %v38, %v206
    %v591 = vmul.f32 %v39, %v206
    %v592 = vmul.f32 %v40, %v210
    %v593 = vmul.f32 %v41, %v210
    %v594 = vmul.f32 %v42, %v214
    %v595 = vmul.f32 %v43, %v214
    %v596 = vmul.f32 %v44, %v218
    %v597 = vmul.f32 %v45, %v218
    %v598 = vmul.f32 %v46, %v222
    %v599 = vmul.f32 %v47, %v222
    %616 = vrot.lane.b32.xlu0 %v584, 116
    %v617 = vpop.permute.xlu0 %616
    %618 = vrot.lane.b32.xlu0 %v585, 116
    %v619 = vpop.permute.xlu0 %618
    %620 = vrot.lane.b32.xlu0 %v586, 116
    %v621 = vpop.permute.xlu0 %620
    %622 = vrot.lane.b32.xlu0 %v587, 116
    %v623 = vpop.permute.xlu0 %622
    %624 = vrot.lane.b32.xlu0 %v588, 116
    %v625 = vpop.permute.xlu0 %624
    %626 = vrot.lane.b32.xlu0 %v589, 116
    %v627 = vpop.permute.xlu0 %626
    %628 = vrot.lane.b32.xlu0 %v590, 116
    %v629 = vpop.permute.xlu0 %628
    %630 = vrot.lane.b32.xlu0 %v591, 116
    %v631 = vpop.permute.xlu0 %630
    %632 = vrot.lane.b32.xlu0 %v592, 116
    %v633 = vpop.permute.xlu0 %632
    %634 = vrot.lane.b32.xlu0 %v593, 116
    %v635 = vpop.permute.xlu0 %634
    %636 = vrot.lane.b32.xlu0 %v594, 116
    %v637 = vpop.permute.xlu0 %636
    %638 = vrot.lane.b32.xlu0 %v595, 116
    %v639 = vpop.permute.xlu0 %638
    %640 = vrot.lane.b32.xlu0 %v596, 116
    %v641 = vpop.permute.xlu0 %640
    %642 = vrot.lane.b32.xlu0 %v597, 116
    %v643 = vpop.permute.xlu0 %642
    %644 = vrot.lane.b32.xlu0 %v598, 116
    %v645 = vpop.permute.xlu0 %644
    %646 = vrot.lane.b32.xlu0 %v599, 116
    %v647 = vpop.permute.xlu0 %646
    %vm648 = vcmask 949248
    %v649 = vsel %vm648, %v617, %v619
    %v650 = vsel %vm648, %v621, %v623
    %v651 = vsel %vm648, %v625, %v627
    %v652 = vsel %vm648, %v629, %v631
    %v653 = vsel %vm648, %v633, %v635
    %v654 = vsel %vm648, %v637, %v639
    %v655 = vsel %vm648, %v641, %v643
    %v656 = vsel %vm648, %v645, %v647
    %v665 = vadd.f32 %v576, %v649
    %v666 = vadd.f32 %v577, %v650
    %v667 = vadd.f32 %v578, %v651
    %v668 = vadd.f32 %v579, %v652
    %v669 = vadd.f32 %v580, %v653
    %v670 = vadd.f32 %v581, %v654
    %v671 = vadd.f32 %v582, %v655
    %v672 = vadd.f32 %v583, %v656
    %v673 = vmul.f32 %v32, %v322
    %v674 = vmul.f32 %v33, %v322
    %v675 = vmul.f32 %v34, %v326
    %v676 = vmul.f32 %v35, %v326
    %v677 = vmul.f32 %v36, %v330
    %v678 = vmul.f32 %v37, %v330
    %v679 = vmul.f32 %v38, %v334
    %v680 = vmul.f32 %v39, %v334
    %v681 = vmul.f32 %v40, %v338
    %v682 = vmul.f32 %v41, %v338
    %v683 = vmul.f32 %v42, %v342
    %v684 = vmul.f32 %v43, %v342
    %v685 = vmul.f32 %v44, %v346
    %v686 = vmul.f32 %v45, %v346
    %v687 = vmul.f32 %v46, %v350
    %v688 = vmul.f32 %v47, %v350
    %705 = vrot.lane.b32.xlu0 %v673, 104
    %v706 = vpop.permute.xlu0 %705
    %707 = vrot.lane.b32.xlu0 %v674, 104
    %v708 = vpop.permute.xlu0 %707
    %709 = vrot.lane.b32.xlu0 %v675, 104
    %v710 = vpop.permute.xlu0 %709
    %711 = vrot.lane.b32.xlu0 %v676, 104
    %v712 = vpop.permute.xlu0 %711
    %713 = vrot.lane.b32.xlu0 %v677, 104
    %v714 = vpop.permute.xlu0 %713
    %715 = vrot.lane.b32.xlu0 %v678, 104
    %v716 = vpop.permute.xlu0 %715
    %717 = vrot.lane.b32.xlu0 %v679, 104
    %v718 = vpop.permute.xlu0 %717
    %719 = vrot.lane.b32.xlu0 %v680, 104
    %v720 = vpop.permute.xlu0 %719
    %721 = vrot.lane.b32.xlu0 %v681, 104
    %v722 = vpop.permute.xlu0 %721
    %723 = vrot.lane.b32.xlu0 %v682, 104
    %v724 = vpop.permute.xlu0 %723
    %725 = vrot.lane.b32.xlu0 %v683, 104
    %v726 = vpop.permute.xlu0 %725
    %727 = vrot.lane.b32.xlu0 %v684, 104
    %v728 = vpop.permute.xlu0 %727
    %729 = vrot.lane.b32.xlu0 %v685, 104
    %v730 = vpop.permute.xlu0 %729
    %731 = vrot.lane.b32.xlu0 %v686, 104
    %v732 = vpop.permute.xlu0 %731
    %733 = vrot.lane.b32.xlu0 %v687, 104
    %v734 = vpop.permute.xlu0 %733
    %735 = vrot.lane.b32.xlu0 %v688, 104
    %v736 = vpop.permute.xlu0 %735
    %vm737 = vcmask 850944
    %v738 = vsel %vm737, %v706, %v708
    %v739 = vsel %vm737, %v710, %v712
    %v740 = vsel %vm737, %v714, %v716
    %v741 = vsel %vm737, %v718, %v720
    %v742 = vsel %vm737, %v722, %v724
    %v743 = vsel %vm737, %v726, %v728
    %v744 = vsel %vm737, %v730, %v732
    %v745 = vsel %vm737, %v734, %v736
    %v754 = vadd.f32 %v665, %v738
    %v755 = vadd.f32 %v666, %v739
    %v756 = vadd.f32 %v667, %v740
    %v757 = vadd.f32 %v668, %v741
    %v758 = vadd.f32 %v669, %v742
    %v759 = vadd.f32 %v670, %v743
    %v760 = vadd.f32 %v671, %v744
    %v761 = vadd.f32 %v672, %v745
    %v762 = vmul.f32 %v32, %v450
    %v763 = vmul.f32 %v33, %v450
    %v764 = vmul.f32 %v34, %v454
    %v765 = vmul.f32 %v35, %v454
    %v766 = vmul.f32 %v36, %v458
    %v767 = vmul.f32 %v37, %v458
    %v768 = vmul.f32 %v38, %v462
    %v769 = vmul.f32 %v39, %v462
    %v770 = vmul.f32 %v40, %v466
    %v771 = vmul.f32 %v41, %v466
    %v772 = vmul.f32 %v42, %v470
    %v773 = vmul.f32 %v43, %v470
    %v774 = vmul.f32 %v44, %v474
    %v775 = vmul.f32 %v45, %v474
    %v776 = vmul.f32 %v46, %v478
    %v777 = vmul.f32 %v47, %v478
    %794 = vrot.lane.b32.xlu0 %v762, 92
    %v795 = vpop.permute.xlu0 %794
    %796 = vrot.lane.b32.xlu0 %v763, 92
    %v797 = vpop.permute.xlu0 %796
    %798 = vrot.lane.b32.xlu0 %v764, 92
    %v799 = vpop.permute.xlu0 %798
    %800 = vrot.lane.b32.xlu0 %v765, 92
    %v801 = vpop.permute.xlu0 %800
    %802 = vrot.lane.b32.xlu0 %v766, 92
    %v803 = vpop.permute.xlu0 %802
    %804 = vrot.lane.b32.xlu0 %v767, 92
    %v805 = vpop.permute.xlu0 %804
    %806 = vrot.lane.b32.xlu0 %v768, 92
    %v807 = vpop.permute.xlu0 %806
    %808 = vrot.lane.b32.xlu0 %v769, 92
    %v809 = vpop.permute.xlu0 %808
    %810 = vrot.lane.b32.xlu0 %v770, 92
    %v811 = vpop.permute.xlu0 %810
    %812 = vrot.lane.b32.xlu0 %v771, 92
    %v813 = vpop.permute.xlu0 %812
    %814 = vrot.lane.b32.xlu0 %v772, 92
    %v815 = vpop.permute.xlu0 %814
    %816 = vrot.lane.b32.xlu0 %v773, 92
    %v817 = vpop.permute.xlu0 %816
    %818 = vrot.lane.b32.xlu0 %v774, 92
    %v819 = vpop.permute.xlu0 %818
    %820 = vrot.lane.b32.xlu0 %v775, 92
    %v821 = vpop.permute.xlu0 %820
    %822 = vrot.lane.b32.xlu0 %v776, 92
    %v823 = vpop.permute.xlu0 %822
    %824 = vrot.lane.b32.xlu0 %v777, 92
    %v825 = vpop.permute.xlu0 %824
    %vm826 = vcmask 752640
    %v827 = vsel %vm826, %v795, %v797
    %v828 = vsel %vm826, %v799, %v801
    %v829 = vsel %vm826, %v803, %v805
    %v830 = vsel %vm826, %v807, %v809
    %v831 = vsel %vm826, %v811, %v813
    %v832 = vsel %vm826, %v815, %v817
    %v833 = vsel %vm826, %v819, %v821
    %v834 = vsel %vm826, %v823, %v825
    %v843 = vadd.f32 %v754, %v827
    %v844 = vadd.f32 %v755, %v828
    %v845 = vadd.f32 %v756, %v829
    %v846 = vadd.f32 %v757, %v830
    %v847 = vadd.f32 %v758, %v831
    %v848 = vadd.f32 %v759, %v832
    %v849 = vadd.f32 %v760, %v833
    %v850 = vadd.f32 %v761, %v834
    %v851 = vmul.f32 %v32, %v98
    %v852 = vmul.f32 %v33, %v98
    %v853 = vmul.f32 %v34, %v102
    %v854 = vmul.f32 %v35, %v102
    %v855 = vmul.f32 %v36, %v106
    %v856 = vmul.f32 %v37, %v106
    %v857 = vmul.f32 %v38, %v110
    %v858 = vmul.f32 %v39, %v110
    %v859 = vmul.f32 %v40, %v114
    %v860 = vmul.f32 %v41, %v114
    %v861 = vmul.f32 %v42, %v118
    %v862 = vmul.f32 %v43, %v118
    %v863 = vmul.f32 %v44, %v122
    %v864 = vmul.f32 %v45, %v122
    %v865 = vmul.f32 %v46, %v126
    %v866 = vmul.f32 %v47, %v126
    %v867 = vmul.f32 %v32, %v226
    %v868 = vmul.f32 %v33, %v226
    %v869 = vmul.f32 %v34, %v230
    %v870 = vmul.f32 %v35, %v230
    %v871 = vmul.f32 %v36, %v234
    %v872 = vmul.f32 %v37, %v234
    %v873 = vmul.f32 %v38, %v238
    %v874 = vmul.f32 %v39, %v238
    %v875 = vmul.f32 %v40, %v242
    %v876 = vmul.f32 %v41, %v242
    %v877 = vmul.f32 %v42, %v246
    %v878 = vmul.f32 %v43, %v246
    %v879 = vmul.f32 %v44, %v250
    %v880 = vmul.f32 %v45, %v250
    %v881 = vmul.f32 %v46, %v254
    %v882 = vmul.f32 %v47, %v254
    %899 = vrot.lane.b32.xlu0 %v867, 116
    %v900 = vpop.permute.xlu0 %899
    %901 = vrot.lane.b32.xlu0 %v868, 116
    %v902 = vpop.permute.xlu0 %901
    %903 = vrot.lane.b32.xlu0 %v869, 116
    %v904 = vpop.permute.xlu0 %903
    %905 = vrot.lane.b32.xlu0 %v870, 116
    %v906 = vpop.permute.xlu0 %905
    %907 = vrot.lane.b32.xlu0 %v871, 116
    %v908 = vpop.permute.xlu0 %907
    %909 = vrot.lane.b32.xlu0 %v872, 116
    %v910 = vpop.permute.xlu0 %909
    %911 = vrot.lane.b32.xlu0 %v873, 116
    %v912 = vpop.permute.xlu0 %911
    %913 = vrot.lane.b32.xlu0 %v874, 116
    %v914 = vpop.permute.xlu0 %913
    %915 = vrot.lane.b32.xlu0 %v875, 116
    %v916 = vpop.permute.xlu0 %915
    %917 = vrot.lane.b32.xlu0 %v876, 116
    %v918 = vpop.permute.xlu0 %917
    %919 = vrot.lane.b32.xlu0 %v877, 116
    %v920 = vpop.permute.xlu0 %919
    %921 = vrot.lane.b32.xlu0 %v878, 116
    %v922 = vpop.permute.xlu0 %921
    %923 = vrot.lane.b32.xlu0 %v879, 116
    %v924 = vpop.permute.xlu0 %923
    %925 = vrot.lane.b32.xlu0 %v880, 116
    %v926 = vpop.permute.xlu0 %925
    %927 = vrot.lane.b32.xlu0 %v881, 116
    %v928 = vpop.permute.xlu0 %927
    %929 = vrot.lane.b32.xlu0 %v882, 116
    %v930 = vpop.permute.xlu0 %929
    %v931 = vsel %vm648, %v900, %v902
    %v932 = vsel %vm648, %v904, %v906
    %v933 = vsel %vm648, %v908, %v910
    %v934 = vsel %vm648, %v912, %v914
    %v935 = vsel %vm648, %v916, %v918
    %v936 = vsel %vm648, %v920, %v922
    %v937 = vsel %vm648, %v924, %v926
    %v938 = vsel %vm648, %v928, %v930
    %v955 = vadd.f32 %v851, %v931
    %v956 = vadd.f32 %v852, %v902
    %v957 = vadd.f32 %v853, %v932
    %v958 = vadd.f32 %v854, %v906
    %v959 = vadd.f32 %v855, %v933
    %v960 = vadd.f32 %v856, %v910
    %v961 = vadd.f32 %v857, %v934
    %v962 = vadd.f32 %v858, %v914
    %v963 = vadd.f32 %v859, %v935
    %v964 = vadd.f32 %v860, %v918
    %v965 = vadd.f32 %v861, %v936
    %v966 = vadd.f32 %v862, %v922
    %v967 = vadd.f32 %v863, %v937
    %v968 = vadd.f32 %v864, %v926
    %v969 = vadd.f32 %v865, %v938
    %v970 = vadd.f32 %v866, %v930
    %v971 = vmul.f32 %v32, %v354
    %v972 = vmul.f32 %v33, %v354
    %v973 = vmul.f32 %v34, %v358
    %v974 = vmul.f32 %v35, %v358
    %v975 = vmul.f32 %v36, %v362
    %v976 = vmul.f32 %v37, %v362
    %v977 = vmul.f32 %v38, %v366
    %v978 = vmul.f32 %v39, %v366
    %v979 = vmul.f32 %v40, %v370
    %v980 = vmul.f32 %v41, %v370
    %v981 = vmul.f32 %v42, %v374
    %v982 = vmul.f32 %v43, %v374
    %v983 = vmul.f32 %v44, %v378
    %v984 = vmul.f32 %v45, %v378
    %v985 = vmul.f32 %v46, %v382
    %v986 = vmul.f32 %v47, %v382
    %1003 = vrot.lane.b32.xlu0 %v971, 104
    %v1004 = vpop.permute.xlu0 %1003
    %1005 = vrot.lane.b32.xlu0 %v972, 104
    %v1006 = vpop.permute.xlu0 %1005
    %1007 = vrot.lane.b32.xlu0 %v973, 104
    %v1008 = vpop.permute.xlu0 %1007
    %1009 = vrot.lane.b32.xlu0 %v974, 104
    %v1010 = vpop.permute.xlu0 %1009
    %1011 = vrot.lane.b32.xlu0 %v975, 104
    %v1012 = vpop.permute.xlu0 %1011
    %1013 = vrot.lane.b32.xlu0 %v976, 104
    %v1014 = vpop.permute.xlu0 %1013
    %1015 = vrot.lane.b32.xlu0 %v977, 104
    %v1016 = vpop.permute.xlu0 %1015
    %1017 = vrot.lane.b32.xlu0 %v978, 104
    %v1018 = vpop.permute.xlu0 %1017
    %1019 = vrot.lane.b32.xlu0 %v979, 104
    %v1020 = vpop.permute.xlu0 %1019
    %1021 = vrot.lane.b32.xlu0 %v980, 104
    %v1022 = vpop.permute.xlu0 %1021
    %1023 = vrot.lane.b32.xlu0 %v981, 104
    %v1024 = vpop.permute.xlu0 %1023
    %1025 = vrot.lane.b32.xlu0 %v982, 104
    %v1026 = vpop.permute.xlu0 %1025
    %1027 = vrot.lane.b32.xlu0 %v983, 104
    %v1028 = vpop.permute.xlu0 %1027
    %1029 = vrot.lane.b32.xlu0 %v984, 104
    %v1030 = vpop.permute.xlu0 %1029
    %1031 = vrot.lane.b32.xlu0 %v985, 104
    %v1032 = vpop.permute.xlu0 %1031
    %1033 = vrot.lane.b32.xlu0 %v986, 104
    %v1034 = vpop.permute.xlu0 %1033
    %v1035 = vsel %vm737, %v1004, %v1006
    %v1036 = vsel %vm737, %v1008, %v1010
    %v1037 = vsel %vm737, %v1012, %v1014
    %v1038 = vsel %vm737, %v1016, %v1018
    %v1039 = vsel %vm737, %v1020, %v1022
    %v1040 = vsel %vm737, %v1024, %v1026
    %v1041 = vsel %vm737, %v1028, %v1030
    %v1042 = vsel %vm737, %v1032, %v1034
    %v1059 = vadd.f32 %v955, %v1035
    %v1060 = vadd.f32 %v956, %v1006
    %v1061 = vadd.f32 %v957, %v1036
    %v1062 = vadd.f32 %v958, %v1010
    %v1063 = vadd.f32 %v959, %v1037
    %v1064 = vadd.f32 %v960, %v1014
    %v1065 = vadd.f32 %v961, %v1038
    %v1066 = vadd.f32 %v962, %v1018
    %v1067 = vadd.f32 %v963, %v1039
    %v1068 = vadd.f32 %v964, %v1022
    %v1069 = vadd.f32 %v965, %v1040
    %v1070 = vadd.f32 %v966, %v1026
    %v1071 = vadd.f32 %v967, %v1041
    %v1072 = vadd.f32 %v968, %v1030
    %v1073 = vadd.f32 %v969, %v1042
    %v1074 = vadd.f32 %v970, %v1034
    %v1075 = vmul.f32 %v32, %v482
    %v1076 = vmul.f32 %v33, %v482
    %v1077 = vmul.f32 %v34, %v486
    %v1078 = vmul.f32 %v35, %v486
    %v1079 = vmul.f32 %v36, %v490
    %v1080 = vmul.f32 %v37, %v490
    %v1081 = vmul.f32 %v38, %v494
    %v1082 = vmul.f32 %v39, %v494
    %v1083 = vmul.f32 %v40, %v498
    %v1084 = vmul.f32 %v41, %v498
    %v1085 = vmul.f32 %v42, %v502
    %v1086 = vmul.f32 %v43, %v502
    %v1087 = vmul.f32 %v44, %v506
    %v1088 = vmul.f32 %v45, %v506
    %v1089 = vmul.f32 %v46, %v510
    %v1090 = vmul.f32 %v47, %v510
    %1107 = vrot.lane.b32.xlu0 %v1075, 92
    %v1108 = vpop.permute.xlu0 %1107
    %1109 = vrot.lane.b32.xlu0 %v1076, 92
    %v1110 = vpop.permute.xlu0 %1109
    %1111 = vrot.lane.b32.xlu0 %v1077, 92
    %v1112 = vpop.permute.xlu0 %1111
    %1113 = vrot.lane.b32.xlu0 %v1078, 92
    %v1114 = vpop.permute.xlu0 %1113
    %1115 = vrot.lane.b32.xlu0 %v1079, 92
    %v1116 = vpop.permute.xlu0 %1115
    %1117 = vrot.lane.b32.xlu0 %v1080, 92
    %v1118 = vpop.permute.xlu0 %1117
    %1119 = vrot.lane.b32.xlu0 %v1081, 92
    %v1120 = vpop.permute.xlu0 %1119
    %1121 = vrot.lane.b32.xlu0 %v1082, 92
    %v1122 = vpop.permute.xlu0 %1121
    %1123 = vrot.lane.b32.xlu0 %v1083, 92
    %v1124 = vpop.permute.xlu0 %1123
    %1125 = vrot.lane.b32.xlu0 %v1084, 92
    %v1126 = vpop.permute.xlu0 %1125
    %1127 = vrot.lane.b32.xlu0 %v1085, 92
    %v1128 = vpop.permute.xlu0 %1127
    %1129 = vrot.lane.b32.xlu0 %v1086, 92
    %v1130 = vpop.permute.xlu0 %1129
    %1131 = vrot.lane.b32.xlu0 %v1087, 92
    %v1132 = vpop.permute.xlu0 %1131
    %1133 = vrot.lane.b32.xlu0 %v1088, 92
    %v1134 = vpop.permute.xlu0 %1133
    %1135 = vrot.lane.b32.xlu0 %v1089, 92
    %v1136 = vpop.permute.xlu0 %1135
    %1137 = vrot.lane.b32.xlu0 %v1090, 92
    %v1138 = vpop.permute.xlu0 %1137
    %v1139 = vsel %vm826, %v1108, %v1110
    %v1140 = vsel %vm826, %v1112, %v1114
    %v1141 = vsel %vm826, %v1116, %v1118
    %v1142 = vsel %vm826, %v1120, %v1122
    %v1143 = vsel %vm826, %v1124, %v1126
    %v1144 = vsel %vm826, %v1128, %v1130
    %v1145 = vsel %vm826, %v1132, %v1134
    %v1146 = vsel %vm826, %v1136, %v1138
    %v1163 = vadd.f32 %v1059, %v1139
    %v1164 = vadd.f32 %v1060, %v1110
    %v1165 = vadd.f32 %v1061, %v1140
    %v1166 = vadd.f32 %v1062, %v1114
    %v1167 = vadd.f32 %v1063, %v1141
    %v1168 = vadd.f32 %v1064, %v1118
    %v1169 = vadd.f32 %v1065, %v1142
    %v1170 = vadd.f32 %v1066, %v1122
    %v1171 = vadd.f32 %v1067, %v1143
    %v1172 = vadd.f32 %v1068, %v1126
    %v1173 = vadd.f32 %v1069, %v1144
    %v1174 = vadd.f32 %v1070, %v1130
    %v1175 = vadd.f32 %v1071, %v1145
    %v1176 = vadd.f32 %v1072, %v1134
    %v1177 = vadd.f32 %v1073, %v1146
    %v1178 = vadd.f32 %v1074, %v1138
    %v1179 = vmul.f32 %v32, %v130
    %v1180 = vmul.f32 %v33, %v130
    %v1181 = vmul.f32 %v34, %v134
    %v1182 = vmul.f32 %v35, %v134
    %v1183 = vmul.f32 %v36, %v138
    %v1184 = vmul.f32 %v37, %v138
    %v1185 = vmul.f32 %v38, %v142
    %v1186 = vmul.f32 %v39, %v142
    %v1187 = vmul.f32 %v40, %v146
    %v1188 = vmul.f32 %v41, %v146
    %v1189 = vmul.f32 %v42, %v150
    %v1190 = vmul.f32 %v43, %v150
    %v1191 = vmul.f32 %v44, %v154
    %v1192 = vmul.f32 %v45, %v154
    %v1193 = vmul.f32 %v46, %v158
    %v1194 = vmul.f32 %v47, %v158
    %v1195 = vmul.f32 %v32, %v258
    %v1196 = vmul.f32 %v33, %v258
    %v1197 = vmul.f32 %v34, %v262
    %v1198 = vmul.f32 %v35, %v262
    %v1199 = vmul.f32 %v36, %v266
    %v1200 = vmul.f32 %v37, %v266
    %v1201 = vmul.f32 %v38, %v270
    %v1202 = vmul.f32 %v39, %v270
    %v1203 = vmul.f32 %v40, %v274
    %v1204 = vmul.f32 %v41, %v274
    %v1205 = vmul.f32 %v42, %v278
    %v1206 = vmul.f32 %v43, %v278
    %v1207 = vmul.f32 %v44, %v282
    %v1208 = vmul.f32 %v45, %v282
    %v1209 = vmul.f32 %v46, %v286
    %v1210 = vmul.f32 %v47, %v286
    %1227 = vrot.lane.b32.xlu0 %v1195, 116
    %v1228 = vpop.permute.xlu0 %1227
    %1229 = vrot.lane.b32.xlu0 %v1196, 116
    %v1230 = vpop.permute.xlu0 %1229
    %1231 = vrot.lane.b32.xlu0 %v1197, 116
    %v1232 = vpop.permute.xlu0 %1231
    %1233 = vrot.lane.b32.xlu0 %v1198, 116
    %v1234 = vpop.permute.xlu0 %1233
    %1235 = vrot.lane.b32.xlu0 %v1199, 116
    %v1236 = vpop.permute.xlu0 %1235
    %1237 = vrot.lane.b32.xlu0 %v1200, 116
    %v1238 = vpop.permute.xlu0 %1237
    %1239 = vrot.lane.b32.xlu0 %v1201, 116
    %v1240 = vpop.permute.xlu0 %1239
    %1241 = vrot.lane.b32.xlu0 %v1202, 116
    %v1242 = vpop.permute.xlu0 %1241
    %1243 = vrot.lane.b32.xlu0 %v1203, 116
    %v1244 = vpop.permute.xlu0 %1243
    %1245 = vrot.lane.b32.xlu0 %v1204, 116
    %v1246 = vpop.permute.xlu0 %1245
    %1247 = vrot.lane.b32.xlu0 %v1205, 116
    %v1248 = vpop.permute.xlu0 %1247
    %1249 = vrot.lane.b32.xlu0 %v1206, 116
    %v1250 = vpop.permute.xlu0 %1249
    %1251 = vrot.lane.b32.xlu0 %v1207, 116
    %v1252 = vpop.permute.xlu0 %1251
    %1253 = vrot.lane.b32.xlu0 %v1208, 116
    %v1254 = vpop.permute.xlu0 %1253
    %1255 = vrot.lane.b32.xlu0 %v1209, 116
    %v1256 = vpop.permute.xlu0 %1255
    %1257 = vrot.lane.b32.xlu0 %v1210, 116
    %v1258 = vpop.permute.xlu0 %1257
    %v1259 = vsel %vm648, %v1228, %v1230
    %v1260 = vsel %vm648, %v1232, %v1234
    %v1261 = vsel %vm648, %v1236, %v1238
    %v1262 = vsel %vm648, %v1240, %v1242
    %v1263 = vsel %vm648, %v1244, %v1246
    %v1264 = vsel %vm648, %v1248, %v1250
    %v1265 = vsel %vm648, %v1252, %v1254
    %v1266 = vsel %vm648, %v1256, %v1258
    %v1283 = vadd.f32 %v1179, %v1259
    %v1284 = vadd.f32 %v1180, %v1230
    %v1285 = vadd.f32 %v1181, %v1260
    %v1286 = vadd.f32 %v1182, %v1234
    %v1287 = vadd.f32 %v1183, %v1261
    %v1288 = vadd.f32 %v1184, %v1238
    %v1289 = vadd.f32 %v1185, %v1262
    %v1290 = vadd.f32 %v1186, %v1242
    %v1291 = vadd.f32 %v1187, %v1263
    %v1292 = vadd.f32 %v1188, %v1246
    %v1293 = vadd.f32 %v1189, %v1264
    %v1294 = vadd.f32 %v1190, %v1250
    %v1295 = vadd.f32 %v1191, %v1265
    %v1296 = vadd.f32 %v1192, %v1254
    %v1297 = vadd.f32 %v1193, %v1266
    %v1298 = vadd.f32 %v1194, %v1258
    %v1299 = vmul.f32 %v32, %v386
    %v1300 = vmul.f32 %v33, %v386
    %v1301 = vmul.f32 %v34, %v390
    %v1302 = vmul.f32 %v35, %v390
    %v1303 = vmul.f32 %v36, %v394
    %v1304 = vmul.f32 %v37, %v394
    %v1305 = vmul.f32 %v38, %v398
    %v1306 = vmul.f32 %v39, %v398
    %v1307 = vmul.f32 %v40, %v402
    %v1308 = vmul.f32 %v41, %v402
    %v1309 = vmul.f32 %v42, %v406
    %v1310 = vmul.f32 %v43, %v406
    %v1311 = vmul.f32 %v44, %v410
    %v1312 = vmul.f32 %v45, %v410
    %v1313 = vmul.f32 %v46, %v414
    %v1314 = vmul.f32 %v47, %v414
    %1331 = vrot.lane.b32.xlu0 %v1299, 104
    %v1332 = vpop.permute.xlu0 %1331
    %1333 = vrot.lane.b32.xlu0 %v1300, 104
    %v1334 = vpop.permute.xlu0 %1333
    %1335 = vrot.lane.b32.xlu0 %v1301, 104
    %v1336 = vpop.permute.xlu0 %1335
    %1337 = vrot.lane.b32.xlu0 %v1302, 104
    %v1338 = vpop.permute.xlu0 %1337
    %1339 = vrot.lane.b32.xlu0 %v1303, 104
    %v1340 = vpop.permute.xlu0 %1339
    %1341 = vrot.lane.b32.xlu0 %v1304, 104
    %v1342 = vpop.permute.xlu0 %1341
    %1343 = vrot.lane.b32.xlu0 %v1305, 104
    %v1344 = vpop.permute.xlu0 %1343
    %1345 = vrot.lane.b32.xlu0 %v1306, 104
    %v1346 = vpop.permute.xlu0 %1345
    %1347 = vrot.lane.b32.xlu0 %v1307, 104
    %v1348 = vpop.permute.xlu0 %1347
    %1349 = vrot.lane.b32.xlu0 %v1308, 104
    %v1350 = vpop.permute.xlu0 %1349
    %1351 = vrot.lane.b32.xlu0 %v1309, 104
    %v1352 = vpop.permute.xlu0 %1351
    %1353 = vrot.lane.b32.xlu0 %v1310, 104
    %v1354 = vpop.permute.xlu0 %1353
    %1355 = vrot.lane.b32.xlu0 %v1311, 104
    %v1356 = vpop.permute.xlu0 %1355
    %1357 = vrot.lane.b32.xlu0 %v1312, 104
    %v1358 = vpop.permute.xlu0 %1357
    %1359 = vrot.lane.b32.xlu0 %v1313, 104
    %v1360 = vpop.permute.xlu0 %1359
    %1361 = vrot.lane.b32.xlu0 %v1314, 104
    %v1362 = vpop.permute.xlu0 %1361
    %v1363 = vsel %vm737, %v1332, %v1334
    %v1364 = vsel %vm737, %v1336, %v1338
    %v1365 = vsel %vm737, %v1340, %v1342
    %v1366 = vsel %vm737, %v1344, %v1346
    %v1367 = vsel %vm737, %v1348, %v1350
    %v1368 = vsel %vm737, %v1352, %v1354
    %v1369 = vsel %vm737, %v1356, %v1358
    %v1370 = vsel %vm737, %v1360, %v1362
    %v1387 = vadd.f32 %v1283, %v1363
    %v1388 = vadd.f32 %v1284, %v1334
    %v1389 = vadd.f32 %v1285, %v1364
    %v1390 = vadd.f32 %v1286, %v1338
    %v1391 = vadd.f32 %v1287, %v1365
    %v1392 = vadd.f32 %v1288, %v1342
    %v1393 = vadd.f32 %v1289, %v1366
    %v1394 = vadd.f32 %v1290, %v1346
    %v1395 = vadd.f32 %v1291, %v1367
    %v1396 = vadd.f32 %v1292, %v1350
    %v1397 = vadd.f32 %v1293, %v1368
    %v1398 = vadd.f32 %v1294, %v1354
    %v1399 = vadd.f32 %v1295, %v1369
    %v1400 = vadd.f32 %v1296, %v1358
    %v1401 = vadd.f32 %v1297, %v1370
    %v1402 = vadd.f32 %v1298, %v1362
    %v1403 = vmul.f32 %v32, %v514
    %v1404 = vmul.f32 %v33, %v514
    %v1405 = vmul.f32 %v34, %v518
    %v1406 = vmul.f32 %v35, %v518
    %v1407 = vmul.f32 %v36, %v522
    %v1408 = vmul.f32 %v37, %v522
    %v1409 = vmul.f32 %v38, %v526
    %v1410 = vmul.f32 %v39, %v526
    %v1411 = vmul.f32 %v40, %v530
    %v1412 = vmul.f32 %v41, %v530
    %v1413 = vmul.f32 %v42, %v534
    %v1414 = vmul.f32 %v43, %v534
    %v1415 = vmul.f32 %v44, %v538
    %v1416 = vmul.f32 %v45, %v538
    %v1417 = vmul.f32 %v46, %v542
    %v1418 = vmul.f32 %v47, %v542
    %1435 = vrot.lane.b32.xlu0 %v1403, 92
    %v1436 = vpop.permute.xlu0 %1435
    %1437 = vrot.lane.b32.xlu0 %v1404, 92
    %v1438 = vpop.permute.xlu0 %1437
    %1439 = vrot.lane.b32.xlu0 %v1405, 92
    %v1440 = vpop.permute.xlu0 %1439
    %1441 = vrot.lane.b32.xlu0 %v1406, 92
    %v1442 = vpop.permute.xlu0 %1441
    %1443 = vrot.lane.b32.xlu0 %v1407, 92
    %v1444 = vpop.permute.xlu0 %1443
    %1445 = vrot.lane.b32.xlu0 %v1408, 92
    %v1446 = vpop.permute.xlu0 %1445
    %1447 = vrot.lane.b32.xlu0 %v1409, 92
    %v1448 = vpop.permute.xlu0 %1447
    %1449 = vrot.lane.b32.xlu0 %v1410, 92
    %v1450 = vpop.permute.xlu0 %1449
    %1451 = vrot.lane.b32.xlu0 %v1411, 92
    %v1452 = vpop.permute.xlu0 %1451
    %1453 = vrot.lane.b32.xlu0 %v1412, 92
    %v1454 = vpop.permute.xlu0 %1453
    %1455 = vrot.lane.b32.xlu0 %v1413, 92
    %v1456 = vpop.permute.xlu0 %1455
    %1457 = vrot.lane.b32.xlu0 %v1414, 92
    %v1458 = vpop.permute.xlu0 %1457
    %1459 = vrot.lane.b32.xlu0 %v1415, 92
    %v1460 = vpop.permute.xlu0 %1459
    %1461 = vrot.lane.b32.xlu0 %v1416, 92
    %v1462 = vpop.permute.xlu0 %1461
    %1463 = vrot.lane.b32.xlu0 %v1417, 92
    %v1464 = vpop.permute.xlu0 %1463
    %1465 = vrot.lane.b32.xlu0 %v1418, 92
    %v1466 = vpop.permute.xlu0 %1465
    %v1467 = vsel %vm826, %v1436, %v1438
    %v1468 = vsel %vm826, %v1440, %v1442
    %v1469 = vsel %vm826, %v1444, %v1446
    %v1470 = vsel %vm826, %v1448, %v1450
    %v1471 = vsel %vm826, %v1452, %v1454
    %v1472 = vsel %vm826, %v1456, %v1458
    %v1473 = vsel %vm826, %v1460, %v1462
    %v1474 = vsel %vm826, %v1464, %v1466
    %v1491 = vadd.f32 %v1387, %v1467
    %v1492 = vadd.f32 %v1388, %v1438
    %v1493 = vadd.f32 %v1389, %v1468
    %v1494 = vadd.f32 %v1390, %v1442
    %v1495 = vadd.f32 %v1391, %v1469
    %v1496 = vadd.f32 %v1392, %v1446
    %v1497 = vadd.f32 %v1393, %v1470
    %v1498 = vadd.f32 %v1394, %v1450
    %v1499 = vadd.f32 %v1395, %v1471
    %v1500 = vadd.f32 %v1396, %v1454
    %v1501 = vadd.f32 %v1397, %v1472
    %v1502 = vadd.f32 %v1398, %v1458
    %v1503 = vadd.f32 %v1399, %v1473
    %v1504 = vadd.f32 %v1400, %v1462
    %v1505 = vadd.f32 %v1401, %v1474
    %v1506 = vadd.f32 %v1402, %v1466
    %v1507 = vmul.f32 %v32, %v162
    %v1508 = vmul.f32 %v33, %v162
    %v1509 = vmul.f32 %v34, %v166
    %v1510 = vmul.f32 %v35, %v166
    %v1511 = vmul.f32 %v36, %v170
    %v1512 = vmul.f32 %v37, %v170
    %v1513 = vmul.f32 %v38, %v174
    %v1514 = vmul.f32 %v39, %v174
    %v1515 = vmul.f32 %v40, %v178
    %v1516 = vmul.f32 %v41, %v178
    %v1517 = vmul.f32 %v42, %v182
    %v1518 = vmul.f32 %v43, %v182
    %v1519 = vmul.f32 %v44, %v186
    %v1520 = vmul.f32 %v45, %v186
    %v1521 = vmul.f32 %v46, %v190
    %v1522 = vmul.f32 %v47, %v190
    %v1523 = vmul.f32 %v32, %v290
    %v1524 = vmul.f32 %v33, %v290
    %v1525 = vmul.f32 %v34, %v294
    %v1526 = vmul.f32 %v35, %v294
    %v1527 = vmul.f32 %v36, %v298
    %v1528 = vmul.f32 %v37, %v298
    %v1529 = vmul.f32 %v38, %v302
    %v1530 = vmul.f32 %v39, %v302
    %v1531 = vmul.f32 %v40, %v306
    %v1532 = vmul.f32 %v41, %v306
    %v1533 = vmul.f32 %v42, %v310
    %v1534 = vmul.f32 %v43, %v310
    %v1535 = vmul.f32 %v44, %v314
    %v1536 = vmul.f32 %v45, %v314
    %v1537 = vmul.f32 %v46, %v318
    %v1538 = vmul.f32 %v47, %v318
    %1555 = vrot.lane.b32.xlu0 %v1523, 116
    %v1556 = vpop.permute.xlu0 %1555
    %1557 = vrot.lane.b32.xlu0 %v1524, 116
    %v1558 = vpop.permute.xlu0 %1557
    %1559 = vrot.lane.b32.xlu0 %v1525, 116
    %v1560 = vpop.permute.xlu0 %1559
    %1561 = vrot.lane.b32.xlu0 %v1526, 116
    %v1562 = vpop.permute.xlu0 %1561
    %1563 = vrot.lane.b32.xlu0 %v1527, 116
    %v1564 = vpop.permute.xlu0 %1563
    %1565 = vrot.lane.b32.xlu0 %v1528, 116
    %v1566 = vpop.permute.xlu0 %1565
    %1567 = vrot.lane.b32.xlu0 %v1529, 116
    %v1568 = vpop.permute.xlu0 %1567
    %1569 = vrot.lane.b32.xlu0 %v1530, 116
    %v1570 = vpop.permute.xlu0 %1569
    %1571 = vrot.lane.b32.xlu0 %v1531, 116
    %v1572 = vpop.permute.xlu0 %1571
    %1573 = vrot.lane.b32.xlu0 %v1532, 116
    %v1574 = vpop.permute.xlu0 %1573
    %1575 = vrot.lane.b32.xlu0 %v1533, 116
    %v1576 = vpop.permute.xlu0 %1575
    %1577 = vrot.lane.b32.xlu0 %v1534, 116
    %v1578 = vpop.permute.xlu0 %1577
    %1579 = vrot.lane.b32.xlu0 %v1535, 116
    %v1580 = vpop.permute.xlu0 %1579
    %1581 = vrot.lane.b32.xlu0 %v1536, 116
    %v1582 = vpop.permute.xlu0 %1581
    %1583 = vrot.lane.b32.xlu0 %v1537, 116
    %v1584 = vpop.permute.xlu0 %1583
    %1585 = vrot.lane.b32.xlu0 %v1538, 116
    %v1586 = vpop.permute.xlu0 %1585
    %v1587 = vsel %vm648, %v1556, %v1558
    %v1588 = vsel %vm648, %v1560, %v1562
    %v1589 = vsel %vm648, %v1564, %v1566
    %v1590 = vsel %vm648, %v1568, %v1570
    %v1591 = vsel %vm648, %v1572, %v1574
    %v1592 = vsel %vm648, %v1576, %v1578
    %v1593 = vsel %vm648, %v1580, %v1582
    %v1594 = vsel %vm648, %v1584, %v1586
    %v1611 = vadd.f32 %v1507, %v1587
    %v1612 = vadd.f32 %v1508, %v1558
    %v1613 = vadd.f32 %v1509, %v1588
    %v1614 = vadd.f32 %v1510, %v1562
    %v1615 = vadd.f32 %v1511, %v1589
    %v1616 = vadd.f32 %v1512, %v1566
    %v1617 = vadd.f32 %v1513, %v1590
    %v1618 = vadd.f32 %v1514, %v1570
    %v1619 = vadd.f32 %v1515, %v1591
    %v1620 = vadd.f32 %v1516, %v1574
    %v1621 = vadd.f32 %v1517, %v1592
    %v1622 = vadd.f32 %v1518, %v1578
    %v1623 = vadd.f32 %v1519, %v1593
    %v1624 = vadd.f32 %v1520, %v1582
    %v1625 = vadd.f32 %v1521, %v1594
    %v1626 = vadd.f32 %v1522, %v1586
    %v1627 = vmul.f32 %v32, %v418
    %v1628 = vmul.f32 %v33, %v418
    %v1629 = vmul.f32 %v34, %v422
    %v1630 = vmul.f32 %v35, %v422
    %v1631 = vmul.f32 %v36, %v426
    %v1632 = vmul.f32 %v37, %v426
    %v1633 = vmul.f32 %v38, %v430
    %v1634 = vmul.f32 %v39, %v430
    %v1635 = vmul.f32 %v40, %v434
    %v1636 = vmul.f32 %v41, %v434
    %v1637 = vmul.f32 %v42, %v438
    %v1638 = vmul.f32 %v43, %v438
    %v1639 = vmul.f32 %v44, %v442
    %v1640 = vmul.f32 %v45, %v442
    %v1641 = vmul.f32 %v46, %v446
    %v1642 = vmul.f32 %v47, %v446
    %1659 = vrot.lane.b32.xlu0 %v1627, 104
    %v1660 = vpop.permute.xlu0 %1659
    %1661 = vrot.lane.b32.xlu0 %v1628, 104
    %v1662 = vpop.permute.xlu0 %1661
    %1663 = vrot.lane.b32.xlu0 %v1629, 104
    %v1664 = vpop.permute.xlu0 %1663
    %1665 = vrot.lane.b32.xlu0 %v1630, 104
    %v1666 = vpop.permute.xlu0 %1665
    %1667 = vrot.lane.b32.xlu0 %v1631, 104
    %v1668 = vpop.permute.xlu0 %1667
    %1669 = vrot.lane.b32.xlu0 %v1632, 104
    %v1670 = vpop.permute.xlu0 %1669
    %1671 = vrot.lane.b32.xlu0 %v1633, 104
    %v1672 = vpop.permute.xlu0 %1671
    %1673 = vrot.lane.b32.xlu0 %v1634, 104
    %v1674 = vpop.permute.xlu0 %1673
    %1675 = vrot.lane.b32.xlu0 %v1635, 104
    %v1676 = vpop.permute.xlu0 %1675
    %1677 = vrot.lane.b32.xlu0 %v1636, 104
    %v1678 = vpop.permute.xlu0 %1677
    %1679 = vrot.lane.b32.xlu0 %v1637, 104
    %v1680 = vpop.permute.xlu0 %1679
    %1681 = vrot.lane.b32.xlu0 %v1638, 104
    %v1682 = vpop.permute.xlu0 %1681
    %1683 = vrot.lane.b32.xlu0 %v1639, 104
    %v1684 = vpop.permute.xlu0 %1683
    %1685 = vrot.lane.b32.xlu0 %v1640, 104
    %v1686 = vpop.permute.xlu0 %1685
    %1687 = vrot.lane.b32.xlu0 %v1641, 104
    %v1688 = vpop.permute.xlu0 %1687
    %1689 = vrot.lane.b32.xlu0 %v1642, 104
    %v1690 = vpop.permute.xlu0 %1689
    %v1691 = vsel %vm737, %v1660, %v1662
    %v1692 = vsel %vm737, %v1664, %v1666
    %v1693 = vsel %vm737, %v1668, %v1670
    %v1694 = vsel %vm737, %v1672, %v1674
    %v1695 = vsel %vm737, %v1676, %v1678
    %v1696 = vsel %vm737, %v1680, %v1682
    %v1697 = vsel %vm737, %v1684, %v1686
    %v1698 = vsel %vm737, %v1688, %v1690
    %v1715 = vadd.f32 %v1611, %v1691
    %v1716 = vadd.f32 %v1612, %v1662
    %v1717 = vadd.f32 %v1613, %v1692
    %v1718 = vadd.f32 %v1614, %v1666
    %v1719 = vadd.f32 %v1615, %v1693
    %v1720 = vadd.f32 %v1616, %v1670
    %v1721 = vadd.f32 %v1617, %v1694
    %v1722 = vadd.f32 %v1618, %v1674
    %v1723 = vadd.f32 %v1619, %v1695
    %v1724 = vadd.f32 %v1620, %v1678
    %v1725 = vadd.f32 %v1621, %v1696
    %v1726 = vadd.f32 %v1622, %v1682
    %v1727 = vadd.f32 %v1623, %v1697
    %v1728 = vadd.f32 %v1624, %v1686
    %v1729 = vadd.f32 %v1625, %v1698
    %v1730 = vadd.f32 %v1626, %v1690
    %v1731 = vmul.f32 %v32, %v546
    %v1732 = vmul.f32 %v33, %v546
    %v1733 = vmul.f32 %v34, %v550
    %v1734 = vmul.f32 %v35, %v550
    %v1735 = vmul.f32 %v36, %v554
    %v1736 = vmul.f32 %v37, %v554
    %v1737 = vmul.f32 %v38, %v558
    %v1738 = vmul.f32 %v39, %v558
    %v1739 = vmul.f32 %v40, %v562
    %v1740 = vmul.f32 %v41, %v562
    %v1741 = vmul.f32 %v42, %v566
    %v1742 = vmul.f32 %v43, %v566
    %v1743 = vmul.f32 %v44, %v570
    %v1744 = vmul.f32 %v45, %v570
    %v1745 = vmul.f32 %v46, %v574
    %v1746 = vmul.f32 %v47, %v574
    %1763 = vrot.lane.b32.xlu0 %v1731, 92
    %v1764 = vpop.permute.xlu0 %1763
    %1765 = vrot.lane.b32.xlu0 %v1732, 92
    %v1766 = vpop.permute.xlu0 %1765
    %1767 = vrot.lane.b32.xlu0 %v1733, 92
    %v1768 = vpop.permute.xlu0 %1767
    %1769 = vrot.lane.b32.xlu0 %v1734, 92
    %v1770 = vpop.permute.xlu0 %1769
    %1771 = vrot.lane.b32.xlu0 %v1735, 92
    %v1772 = vpop.permute.xlu0 %1771
    %1773 = vrot.lane.b32.xlu0 %v1736, 92
    %v1774 = vpop.permute.xlu0 %1773
    %1775 = vrot.lane.b32.xlu0 %v1737, 92
    %v1776 = vpop.permute.xlu0 %1775
    %1777 = vrot.lane.b32.xlu0 %v1738, 92
    %v1778 = vpop.permute.xlu0 %1777
    %1779 = vrot.lane.b32.xlu0 %v1739, 92
    %v1780 = vpop.permute.xlu0 %1779
    %1781 = vrot.lane.b32.xlu0 %v1740, 92
    %v1782 = vpop.permute.xlu0 %1781
    %1783 = vrot.lane.b32.xlu0 %v1741, 92
    %v1784 = vpop.permute.xlu0 %1783
    %1785 = vrot.lane.b32.xlu0 %v1742, 92
    %v1786 = vpop.permute.xlu0 %1785
    %1787 = vrot.lane.b32.xlu0 %v1743, 92
    %v1788 = vpop.permute.xlu0 %1787
    %1789 = vrot.lane.b32.xlu0 %v1744, 92
    %v1790 = vpop.permute.xlu0 %1789
    %1791 = vrot.lane.b32.xlu0 %v1745, 92
    %v1792 = vpop.permute.xlu0 %1791
    %1793 = vrot.lane.b32.xlu0 %v1746, 92
    %v1794 = vpop.permute.xlu0 %1793
    %v1795 = vsel %vm826, %v1764, %v1766
    %v1796 = vsel %vm826, %v1768, %v1770
    %v1797 = vsel %vm826, %v1772, %v1774
    %v1798 = vsel %vm826, %v1776, %v1778
    %v1799 = vsel %vm826, %v1780, %v1782
    %v1800 = vsel %vm826, %v1784, %v1786
    %v1801 = vsel %vm826, %v1788, %v1790
    %v1802 = vsel %vm826, %v1792, %v1794
    %v1819 = vadd.f32 %v1715, %v1795
    %v1820 = vadd.f32 %v1716, %v1766
    %v1821 = vadd.f32 %v1717, %v1796
    %v1822 = vadd.f32 %v1718, %v1770
    %v1823 = vadd.f32 %v1719, %v1797
    %v1824 = vadd.f32 %v1720, %v1774
    %v1825 = vadd.f32 %v1721, %v1798
    %v1826 = vadd.f32 %v1722, %v1778
    %v1827 = vadd.f32 %v1723, %v1799
    %v1828 = vadd.f32 %v1724, %v1782
    %v1829 = vadd.f32 %v1725, %v1800
    %v1830 = vadd.f32 %v1726, %v1786
    %v1831 = vadd.f32 %v1727, %v1801
    %v1832 = vadd.f32 %v1728, %v1790
    %v1833 = vadd.f32 %v1729, %v1802
    %v1834 = vadd.f32 %v1730, %v1794
    %1851 = vrot.lane.b32.xlu0 %v1163, 127
    %v1852 = vpop.permute.xlu0 %1851
    %1853 = vrot.lane.b32.xlu0 %v1164, 127
    %v1854 = vpop.permute.xlu0 %1853
    %1855 = vrot.lane.b32.xlu0 %v1165, 127
    %v1856 = vpop.permute.xlu0 %1855
    %1857 = vrot.lane.b32.xlu0 %v1166, 127
    %v1858 = vpop.permute.xlu0 %1857
    %1859 = vrot.lane.b32.xlu0 %v1167, 127
    %v1860 = vpop.permute.xlu0 %1859
    %1861 = vrot.lane.b32.xlu0 %v1168, 127
    %v1862 = vpop.permute.xlu0 %1861
    %1863 = vrot.lane.b32.xlu0 %v1169, 127
    %v1864 = vpop.permute.xlu0 %1863
    %1865 = vrot.lane.b32.xlu0 %v1170, 127
    %v1866 = vpop.permute.xlu0 %1865
    %1867 = vrot.lane.b32.xlu0 %v1171, 127
    %v1868 = vpop.permute.xlu0 %1867
    %1869 = vrot.lane.b32.xlu0 %v1172, 127
    %v1870 = vpop.permute.xlu0 %1869
    %1871 = vrot.lane.b32.xlu0 %v1173, 127
    %v1872 = vpop.permute.xlu0 %1871
    %1873 = vrot.lane.b32.xlu0 %v1174, 127
    %v1874 = vpop.permute.xlu0 %1873
    %1875 = vrot.lane.b32.xlu0 %v1175, 127
    %v1876 = vpop.permute.xlu0 %1875
    %1877 = vrot.lane.b32.xlu0 %v1176, 127
    %v1878 = vpop.permute.xlu0 %1877
    %1879 = vrot.lane.b32.xlu0 %v1177, 127
    %v1880 = vpop.permute.xlu0 %1879
    %1881 = vrot.lane.b32.xlu0 %v1178, 127
    %v1882 = vpop.permute.xlu0 %1881
    %vm1883 = vcmask 1039360
    %v1884 = vsel %vm1883, %v1852, %v1854
    %v1885 = vsel %vm1883, %v1856, %v1858
    %v1886 = vsel %vm1883, %v1860, %v1862
    %v1887 = vsel %vm1883, %v1864, %v1866
    %v1888 = vsel %vm1883, %v1868, %v1870
    %v1889 = vsel %vm1883, %v1872, %v1874
    %v1890 = vsel %vm1883, %v1876, %v1878
    %v1891 = vsel %vm1883, %v1880, %v1882
    %v1900 = vadd.f32 %v843, %v1884
    %v1901 = vadd.f32 %v844, %v1885
    %v1902 = vadd.f32 %v845, %v1886
    %v1903 = vadd.f32 %v846, %v1887
    %v1904 = vadd.f32 %v847, %v1888
    %v1905 = vadd.f32 %v848, %v1889
    %v1906 = vadd.f32 %v849, %v1890
    %v1907 = vadd.f32 %v850, %v1891
    %1924 = vrot.lane.b32.xlu0 %v1819, 127
    %v1925 = vpop.permute.xlu0 %1924
    %1926 = vrot.lane.b32.xlu0 %v1820, 127
    %v1927 = vpop.permute.xlu0 %1926
    %1928 = vrot.lane.b32.xlu0 %v1821, 127
    %v1929 = vpop.permute.xlu0 %1928
    %1930 = vrot.lane.b32.xlu0 %v1822, 127
    %v1931 = vpop.permute.xlu0 %1930
    %1932 = vrot.lane.b32.xlu0 %v1823, 127
    %v1933 = vpop.permute.xlu0 %1932
    %1934 = vrot.lane.b32.xlu0 %v1824, 127
    %v1935 = vpop.permute.xlu0 %1934
    %1936 = vrot.lane.b32.xlu0 %v1825, 127
    %v1937 = vpop.permute.xlu0 %1936
    %1938 = vrot.lane.b32.xlu0 %v1826, 127
    %v1939 = vpop.permute.xlu0 %1938
    %1940 = vrot.lane.b32.xlu0 %v1827, 127
    %v1941 = vpop.permute.xlu0 %1940
    %1942 = vrot.lane.b32.xlu0 %v1828, 127
    %v1943 = vpop.permute.xlu0 %1942
    %1944 = vrot.lane.b32.xlu0 %v1829, 127
    %v1945 = vpop.permute.xlu0 %1944
    %1946 = vrot.lane.b32.xlu0 %v1830, 127
    %v1947 = vpop.permute.xlu0 %1946
    %1948 = vrot.lane.b32.xlu0 %v1831, 127
    %v1949 = vpop.permute.xlu0 %1948
    %1950 = vrot.lane.b32.xlu0 %v1832, 127
    %v1951 = vpop.permute.xlu0 %1950
    %1952 = vrot.lane.b32.xlu0 %v1833, 127
    %v1953 = vpop.permute.xlu0 %1952
    %1954 = vrot.lane.b32.xlu0 %v1834, 127
    %v1955 = vpop.permute.xlu0 %1954
    %v1956 = vsel %vm1883, %v1925, %v1927
    %v1957 = vsel %vm1883, %v1929, %v1931
    %v1958 = vsel %vm1883, %v1933, %v1935
    %v1959 = vsel %vm1883, %v1937, %v1939
    %v1960 = vsel %vm1883, %v1941, %v1943
    %v1961 = vsel %vm1883, %v1945, %v1947
    %v1962 = vsel %vm1883, %v1949, %v1951
    %v1963 = vsel %vm1883, %v1953, %v1955
    %v1980 = vadd.f32 %v1491, %v1956
    %v1981 = vadd.f32 %v1492, %v1927
    %v1982 = vadd.f32 %v1493, %v1957
    %v1983 = vadd.f32 %v1494, %v1931
    %v1984 = vadd.f32 %v1495, %v1958
    %v1985 = vadd.f32 %v1496, %v1935
    %v1986 = vadd.f32 %v1497, %v1959
    %v1987 = vadd.f32 %v1498, %v1939
    %v1988 = vadd.f32 %v1499, %v1960
    %v1989 = vadd.f32 %v1500, %v1943
    %v1990 = vadd.f32 %v1501, %v1961
    %v1991 = vadd.f32 %v1502, %v1947
    %v1992 = vadd.f32 %v1503, %v1962
    %v1993 = vadd.f32 %v1504, %v1951
    %v1994 = vadd.f32 %v1505, %v1963
    %v1995 = vadd.f32 %v1506, %v1955
    %2012 = vrot.lane.b32.xlu0 %v1980, 126
    %v2013 = vpop.permute.xlu0 %2012
    %2014 = vrot.lane.b32.xlu0 %v1981, 126
    %v2015 = vpop.permute.xlu0 %2014
    %2016 = vrot.lane.b32.xlu0 %v1982, 126
    %v2017 = vpop.permute.xlu0 %2016
    %2018 = vrot.lane.b32.xlu0 %v1983, 126
    %v2019 = vpop.permute.xlu0 %2018
    %2020 = vrot.lane.b32.xlu0 %v1984, 126
    %v2021 = vpop.permute.xlu0 %2020
    %2022 = vrot.lane.b32.xlu0 %v1985, 126
    %v2023 = vpop.permute.xlu0 %2022
    %2024 = vrot.lane.b32.xlu0 %v1986, 126
    %v2025 = vpop.permute.xlu0 %2024
    %2026 = vrot.lane.b32.xlu0 %v1987, 126
    %v2027 = vpop.permute.xlu0 %2026
    %2028 = vrot.lane.b32.xlu0 %v1988, 126
    %v2029 = vpop.permute.xlu0 %2028
    %2030 = vrot.lane.b32.xlu0 %v1989, 126
    %v2031 = vpop.permute.xlu0 %2030
    %2032 = vrot.lane.b32.xlu0 %v1990, 126
    %v2033 = vpop.permute.xlu0 %2032
    %2034 = vrot.lane.b32.xlu0 %v1991, 126
    %v2035 = vpop.permute.xlu0 %2034
    %2036 = vrot.lane.b32.xlu0 %v1992, 126
    %v2037 = vpop.permute.xlu0 %2036
    %2038 = vrot.lane.b32.xlu0 %v1993, 126
    %v2039 = vpop.permute.xlu0 %2038
    %2040 = vrot.lane.b32.xlu0 %v1994, 126
    %v2041 = vpop.permute.xlu0 %2040
    %2042 = vrot.lane.b32.xlu0 %v1995, 126
    %v2043 = vpop.permute.xlu0 %2042
    %vm2044 = vcmask 1031168
    %v2045 = vsel %vm2044, %v2013, %v2015
    %v2046 = vsel %vm2044, %v2017, %v2019
    %v2047 = vsel %vm2044, %v2021, %v2023
    %v2048 = vsel %vm2044, %v2025, %v2027
    %v2049 = vsel %vm2044, %v2029, %v2031
    %v2050 = vsel %vm2044, %v2033, %v2035
    %v2051 = vsel %vm2044, %v2037, %v2039
    %v2052 = vsel %vm2044, %v2041, %v2043
    %v2061 = vadd.f32 %v1900, %v2045
    %v2062 = vadd.f32 %v1901, %v2046
    %v2063 = vadd.f32 %v1902, %v2047
    %v2064 = vadd.f32 %v1903, %v2048
    %v2065 = vadd.f32 %v1904, %v2049
    %v2066 = vadd.f32 %v1905, %v2050
    %v2067 = vadd.f32 %v1906, %v2051
    %v2068 = vadd.f32 %v1907, %v2052
    %v2069 = vld [vmem:[#allocation2] sm:$0xff]
    %v2070 = vld [vmem:[#allocation2 + $0x8] sm:$0xff]
    %v2071 = vld [vmem:[#allocation2 + $0x10] sm:$0xff]
    %v2072 = vld [vmem:[#allocation2 + $0x18] sm:$0xff]
    %v2073 = vld [vmem:[%s3] sm:$0xff]
    %v2074 = vld [vmem:[%s3 + $0x8] sm:$0xff]
    %v2075 = vld [vmem:[%s3 + $0x10] sm:$0xff]
    %v2076 = vld [vmem:[%s3 + $0x18] sm:$0xff]
    %2078 = vset.pattern.permute.xlu0 0
    %2079 = vperm.xlu0 %2078, %v2073
    %v2080 = vpop.permute.xlu0 %2079
    %2083 = vset.pattern.permute.xlu0 0
    %2084 = vperm.xlu0 %2083, %v2074
    %v2085 = vpop.permute.xlu0 %2084
    %2088 = vset.pattern.permute.xlu0 0
    %2089 = vperm.xlu0 %2088, %v2075
    %v2090 = vpop.permute.xlu0 %2089
    %2093 = vset.pattern.permute.xlu0 0
    %2094 = vperm.xlu0 %2093, %v2076
    %v2095 = vpop.permute.xlu0 %2094
    %vm2097 = vcmask 261120
    %v2099 = vsel %vm2097, %v2069, 0
    %v2102 = vsel %vm2097, %v2070, 0
    %v2105 = vsel %vm2097, %v2071, 0
    %v2108 = vsel %vm2097, %v2072, 0
    %2110 = vmatprep.subr.mxu0 0.0
    %2111 = vmatpush1.msra.mxu0 %v2061
    %2112 = vmatprep.subr.mxu0 0.0
    %2113 = vmatpush1.msra.mxu0 %v2062
    %2114 = vmatprep.subr.mxu0 0.0
    %2115 = vmatpush1.msra.mxu0 %v2063
    %2116 = vmatprep.subr.mxu0 0.0
    %2117 = vmatpush1.msra.mxu0 %v2064
    %2118 = vmatprep.subr.mxu0 0.0
    %2119 = vmatpush1.msra.mxu0 0.0
    %2120 = vmatprep.subr.mxu0 0.0
    %2121 = vmatpush1.msra.mxu0 0.0
    %2122 = vmatprep.subr.mxu0 0.0
    %2123 = vmatpush1.msra.mxu0 0.0
    %2124 = vmatprep.subr.mxu0 0.0
    %2125 = vmatpush1.msra.mxu0 0.0
    %2126 = vmatprep.subr.mxu0 0.0
    %2127 = vmatpush1.msra.mxu0 0.0
    %2128 = vmatprep.subr.mxu0 0.0
    %2129 = vmatpush1.msra.mxu0 0.0
    %2130 = vmatprep.subr.mxu0 0.0
    %2131 = vmatpush1.msra.mxu0 0.0
    %2132 = vmatprep.subr.mxu0 0.0
    %2133 = vmatpush1.msra.mxu0 0.0
    %2134 = vmatprep.subr.mxu0 0.0
    %2135 = vmatpush1.msra.mxu0 0.0
    %2136 = vmatprep.subr.mxu0 0.0
    %2137 = vmatpush1.msra.mxu0 0.0
    %2138 = vmatprep.subr.mxu0 0.0
    %2139 = vmatpush1.msra.mxu0 0.0
    %2140 = vmatprep.subr.mxu0 0.0
    %2141 = vmatpush1.msra.mxu0 0.0
    %2142 = vmatprep.subr.mxu0 0.0
    %2143 = vmatpush1.msra.mxu0 0.0
    %2144 = vmatprep.subr.mxu0 0.0
    %2145 = vmatpush1.msra.mxu0 0.0
    %2146 = vmatprep.subr.mxu0 0.0
    %2147 = vmatpush1.msra.mxu0 0.0
    %2148 = vmatprep.subr.mxu0 0.0
    %2149 = vmatpush1.msra.mxu0 0.0
    %2150 = vmatprep.subr.mxu0 0.0
    %2151 = vmatpush1.msra.mxu0 0.0
    %2152 = vmatprep.subr.mxu0 0.0
    %2153 = vmatpush1.msra.mxu0 0.0
    %2154 = vmatprep.subr.mxu0 0.0
    %2155 = vmatpush1.msra.mxu0 0.0
    %2156 = vmatprep.subr.mxu0 0.0
    %2157 = vmatpush1.msra.mxu0 0.0
    %2158 = vmatprep.subr.mxu0 0.0
    %2159 = vmatpush1.msra.mxu0 0.0
    %2160 = vmatprep.subr.mxu0 0.0
    %2161 = vmatpush1.msra.mxu0 0.0
    %2162 = vmatprep.subr.mxu0 0.0
    %2163 = vmatpush1.msra.mxu0 0.0
    %2164 = vmatprep.subr.mxu0 0.0
    %2165 = vmatpush1.msra.mxu0 0.0
    %2166 = vmatprep.subr.mxu0 0.0
    %2167 = vmatpush1.msra.mxu0 0.0
    %2168 = vmatprep.subr.mxu0 0.0
    %2169 = vmatpush1.msra.mxu0 0.0
    %2170 = vmatprep.subr.mxu0 0.0
    %2171 = vmatpush1.msra.mxu0 0.0
    %2172 = vmatprep.subr.mxu0 0.0
    %2173 = vmatpush1.msra.mxu0 0.0
    %2174 = vmatprep.mubr.f32.mxu0 0.0
    %2175 = vmatmul.mubr.f32.gmra.mrb[0].mxu0 %v2099
    %v2176 = vpop.f32.mrb[0].mxu0
    %v2177 = vadd.f32 %v2080, %v2176
    %v2178 = vpop.f32.mrb[0].mxu0
    %2179 = vmatprep.mubr.f32.mxu0 0.0
    %2180 = vmatmul.mubr.f32.gmra.mrb[0].mxu0 %v2102
    %v2181 = vpop.f32.mrb[0].mxu0
    %v2182 = vadd.f32 %v2085, %v2181
    %v2183 = vpop.f32.mrb[0].mxu0
    %2184 = vmatprep.mubr.f32.mxu0 0.0
    %2185 = vmatmul.mubr.f32.gmra.mrb[0].mxu0 %v2105
    %v2186 = vpop.f32.mrb[0].mxu0
    %v2187 = vadd.f32 %v2090, %v2186
    %v2188 = vpop.f32.mrb[0].mxu0
    %2189 = vmatprep.mubr.f32.mxu0 0.0
    %2190 = vmatmul.mubr.f32.gmra.mrb[0].mxu0 %v2108
    %v2191 = vpop.f32.mrb[0].mxu0
    %v2192 = vadd.f32 %v2095, %v2191
    %v2193 = vpop.f32.mrb[0].mxu0
    %2194 = vdwg.mxu0
    %2195 = vst [vmem:[#allocation5] sm:$0xff] %v2177
    %2196 = vst [vmem:[#allocation5 + $0x8] sm:$0xff] %v2182
    %2197 = vst [vmem:[#allocation5 + $0x10] sm:$0xff] %v2187
    %2198 = vst [vmem:[#allocation5 + $0x18] sm:$0xff] %v2192
    %2199 = vmatprep.subr.mxu0 0.0
    %2200 = vmatpush1.msra.mxu0 %v2065
    %2201 = vmatprep.subr.mxu0 0.0
    %2202 = vmatpush1.msra.mxu0 %v2066
    %2203 = vmatprep.subr.mxu0 0.0
    %2204 = vmatpush1.msra.mxu0 %v2067
    %2205 = vmatprep.subr.mxu0 0.0
    %2206 = vmatpush1.msra.mxu0 %v2068
    %2207 = vmatprep.subr.mxu0 0.0
    %2208 = vmatpush1.msra.mxu0 0.0
    %2209 = vmatprep.subr.mxu0 0.0
    %2210 = vmatpush1.msra.mxu0 0.0
    %2211 = vmatprep.subr.mxu0 0.0
    %2212 = vmatpush1.msra.mxu0 0.0
    %2213 = vmatprep.subr.mxu0 0.0
    %2214 = vmatpush1.msra.mxu0 0.0
    %2215 = vmatprep.subr.mxu0 0.0
    %2216 = vmatpush1.msra.mxu0 0.0
    %2217 = vmatprep.subr.mxu0 0.0
    %2218 = vmatpush1.msra.mxu0 0.0
    %2219 = vmatprep.subr.mxu0 0.0
    %2220 = vmatpush1.msra.mxu0 0.0
    %2221 = vmatprep.subr.mxu0 0.0
    %2222 = vmatpush1.msra.mxu0 0.0
    %2223 = vmatprep.subr.mxu0 0.0
    %2224 = vmatpush1.msra.mxu0 0.0
    %2225 = vmatprep.subr.mxu0 0.0
    %2226 = vmatpush1.msra.mxu0 0.0
    %2227 = vmatprep.subr.mxu0 0.0
    %2228 = vmatpush1.msra.mxu0 0.0
    %2229 = vmatprep.subr.mxu0 0.0
    %2230 = vmatpush1.msra.mxu0 0.0
    %2231 = vmatprep.subr.mxu0 0.0
    %2232 = vmatpush1.msra.mxu0 0.0
    %2233 = vmatprep.subr.mxu0 0.0
    %2234 = vmatpush1.msra.mxu0 0.0
    %2235 = vmatprep.subr.mxu0 0.0
    %2236 = vmatpush1.msra.mxu0 0.0
    %2237 = vmatprep.subr.mxu0 0.0
    %2238 = vmatpush1.msra.mxu0 0.0
    %2239 = vmatprep.subr.mxu0 0.0
    %2240 = vmatpush1.msra.mxu0 0.0
    %2241 = vmatprep.subr.mxu0 0.0
    %2242 = vmatpush1.msra.mxu0 0.0
    %2243 = vmatprep.subr.mxu0 0.0
    %2244 = vmatpush1.msra.mxu0 0.0
    %2245 = vmatprep.subr.mxu0 0.0
    %2246 = vmatpush1.msra.mxu0 0.0
    %2247 = vmatprep.subr.mxu0 0.0
    %2248 = vmatpush1.msra.mxu0 0.0
    %2249 = vmatprep.subr.mxu0 0.0
    %2250 = vmatpush1.msra.mxu0 0.0
    %2251 = vmatprep.subr.mxu0 0.0
    %2252 = vmatpush1.msra.mxu0 0.0
    %2253 = vmatprep.subr.mxu0 0.0
    %2254 = vmatpush1.msra.mxu0 0.0
    %2255 = vmatprep.subr.mxu0 0.0
    %2256 = vmatpush1.msra.mxu0 0.0
    %2257 = vmatprep.subr.mxu0 0.0
    %2258 = vmatpush1.msra.mxu0 0.0
    %2259 = vmatprep.subr.mxu0 0.0
    %2260 = vmatpush1.msra.mxu0 0.0
    %2261 = vmatprep.subr.mxu0 0.0
    %2262 = vmatpush1.msra.mxu0 0.0
    %2263 = vmatprep.mubr.f32.mxu0 0.0
    %2264 = vmatmul.mubr.f32.gmra.mrb[0].mxu0 %v2099
    %v2265 = vpop.f32.mrb[0].mxu0
    %v2266 = vadd.f32 %v2080, %v2265
    %v2267 = vpop.f32.mrb[0].mxu0
    %2268 = vmatprep.mubr.f32.mxu0 0.0
    %2269 = vmatmul.mubr.f32.gmra.mrb[0].mxu0 %v2102
    %v2270 = vpop.f32.mrb[0].mxu0
    %v2271 = vadd.f32 %v2085, %v2270
    %v2272 = vpop.f32.mrb[0].mxu0
    %2273 = vmatprep.mubr.f32.mxu0 0.0
    %2274 = vmatmul.mubr.f32.gmra.mrb[0].mxu0 %v2105
    %v2275 = vpop.f32.mrb[0].mxu0
    %v2276 = vadd.f32 %v2090, %v2275
    %v2277 = vpop.f32.mrb[0].mxu0
    %2278 = vmatprep.mubr.f32.mxu0 0.0
    %2279 = vmatmul.mubr.f32.gmra.mrb[0].mxu0 %v2108
    %v2280 = vpop.f32.mrb[0].mxu0
    %v2281 = vadd.f32 %v2095, %v2280
    %v2282 = vpop.f32.mrb[0].mxu0
    %2283 = vdwg.mxu0
    %s2284 = scalar_lea.vmem [#allocation5], 32
    %2285 = vst [vmem:[%s2284] sm:$0xff] %v2266
    %2286 = vst [vmem:[%s2284 + $0x8] sm:$0xff] %v2271
    %2287 = vst [vmem:[%s2284 + $0x10] sm:$0xff] %v2276
    %2288 = vst [vmem:[%s2284 + $0x18] sm:$0xff] %v2281
    // Predicated region
    $region22: #{tpu_custom_call.1} parent=1 // pred_check
      _
    $region23: #{tpu_custom_call.1} parent=1 // pred_check_branch
      %2290 = sbr.rel (0) target = $region25
    $region24: #{tpu_custom_call.1} parent=1 // pred_region
      %s2292 = ssub.s32 1024, 1024
      %2293 = vsyncadd [#allocation4], %s2292
      %s2294 = sshll.u32 [#allocation5], 4
      %s2295 = int_to_ptr.vmem [resolvable:$true] %s2294
      %2300 = dma.vmem_to_hbm [thread:$0]  %s2295, 1024, %s4, [#allocation4], 128, 128, 8
    $region25: #{tpu_custom_call.1} parent=1 // pred_fallthru
      _
    // Predicated region
    $region26: #{tpu_custom_call.1} parent=1 // pred_check
      _
    $region27: #{tpu_custom_call.1} parent=1 // pred_check_branch
      %2302 = sbr.rel (0) target = $region29
    $region28: #{tpu_custom_call.1} parent=1 // pred_region
      %2303 = dma.done [#allocation4], 1024
    $region29: #{tpu_custom_call.1} parent=1 // pred_fallthru
      _
    %2304 = vsyncpa [#allocation3], 1
    %2305 = vsyncpa [#allocation4], 1

</llo_original>
